<compile_context>
chip_gen: v7x
topology: tpu7x:2x2x1
jax: 0.10.0
libtpu: 0.0.40
codegen_flags: <defaults>
</compile_context>

<pallas_src>
import functools

import numpy as np
import jax
import jax.numpy as jnp
from jax.experimental import pallas as pl
from jax.experimental.pallas import tpu as pltpu


def _round_up(n, m):
    return ((n + m - 1) // m) * m


# ----------------------------------------------------------------------------
# Pallas kernel: fused Conv3d (stride 1) + per-channel scale/bias + optional ReLU
# One grid step computes one valid output depth plane of one batch element.
# ----------------------------------------------------------------------------
def _conv_kernel(*refs, n_xrefs, kh_taps, row_stride, n_rows, relu):
    # refs = (x_ref_0 .. x_ref_{KD-1}, w_ref, s_ref, b_ref, o_ref)
    #   x_ref_kd : (Hp*Wo_pad, KW*Cin)  bf16   depth slice d+kd (W-im2col'ed)
    #   w_ref    : (KD*KH, KW*Cin, Cout) bf16
    #   s_ref/b_ref : (1, Cout) f32  folded BN scale / bias (or conv bias)
    #   o_ref    : (Ho*Wo_pad, Cout) f32
    x_refs = refs[:n_xrefs]
    w_ref, s_ref, b_ref, o_ref = refs[n_xrefs:n_xrefs + 4]
    cout = o_ref.shape[-1]
    acc = jnp.zeros((n_rows, cout), jnp.float32)
    for kd in range(n_xrefs):
        xr = x_refs[kd]
        for kh in range(kh_taps):
            off = kh * row_stride            # static, multiple of 8 (aligned)
            lhs = xr[pl.ds(off, n_rows), :]  # stream directly from the VMEM ref
            acc = acc + jnp.dot(
                lhs, w_ref[kd * kh_taps + kh], preferred_element_type=jnp.float32
            )
    y = acc * s_ref[...] + b_ref[...]        # f32 epilogue (v5e: no bf16 VPU)
    if relu:
        y = jnp.maximum(y, 0.0)
    o_ref[...] = y.astype(o_ref.dtype)


def conv3d_bn_act(x, w, scale, bias, *, padding, relu=True):
    """x: (B, D, H, W, Cin) f32; w: (KD, KH, KW, Cin, Cout); stride 1."""
    B, D, H, W, Cin = x.shape
    KD, KH, KW, _, Cout = w.shape
    p = padding
    Dp, Hp, Wp = D + 2 * p, H + 2 * p, W + 2 * p
    Do, Ho, Wo = Dp - KD + 1, Hp - KH + 1, Wp - KW + 1
    Wo_pad = max(_round_up(Wo, 8), 8)        # sublane-aligned row stride

    # Zero-pad spatially and cast to bf16 for the MXU.
    xp = jnp.pad(x, ((0, 0), (p, p), (p, p), (p, p), (0, 0))).astype(jnp.bfloat16)

    # KW-fused im2col along W: last axis becomes KW*Cin (index = kw*Cin + c).
    if KW > 1:
        xw = jnp.concatenate(
            [xp[:, :, :, kw:kw + Wo, :] for kw in range(KW)], axis=-1
        )
    else:
        xw = xp
    if Wo_pad != Wo:
        xw = jnp.pad(xw, ((0, 0), (0, 0), (0, 0), (0, Wo_pad - Wo), (0, 0)))

    K = KW * Cin
    HWp = Hp * Wo_pad            # rows per input depth slice
    n_rows = Ho * Wo_pad         # rows per output depth plane
    xw = xw.reshape(B, Dp, HWp, K)

    # (KD, KH, KW, Cin, Cout) -> (KD*KH, KW*Cin, Cout): matches im2col ordering.
    w_flat = w.reshape(KD * KH, KW * Cin, Cout).astype(jnp.bfloat16)

    kernel = functools.partial(
        _conv_kernel, n_xrefs=KD, kh_taps=KH, row_stride=Wo_pad,
        n_rows=n_rows, relu=relu,
    )

    # Pass xw once per kd so each grid step (b, do) sees depth slices do..do+KD-1.
    x_specs = [
        pl.BlockSpec((None, None, HWp, K),
                     (lambda b, d, kd=kd: (b, d + kd, 0, 0)))
        for kd in range(KD)
    ]

    y = pl.pallas_call(
        kernel,
        out_shape=jax.ShapeDtypeStruct((B, Do, n_rows, Cout), jnp.float32),
        grid_spec=pltpu.PrefetchScalarGridSpec(
            num_scalar_prefetch=0,
            grid=(B, Do),
            in_specs=x_specs + [
                pl.BlockSpec((KD * KH, K, Cout), lambda b, d: (0, 0, 0)),
                pl.BlockSpec((1, Cout), lambda b, d: (0, 0)),
                pl.BlockSpec((1, Cout), lambda b, d: (0, 0)),
            ],
            out_specs=pl.BlockSpec((None, None, n_rows, Cout),
                                   lambda b, d: (b, d, 0, 0)),
        ),
        compiler_params=pltpu.CompilerParams(
            dimension_semantics=("parallel", "parallel"),
            vmem_limit_bytes=48 * 1024 * 1024,   # <= v7x 64 MiB physical VMEM
        ),
    )(*([xw] * KD), w_flat, scale, bias)

    y = y.reshape(B, Do, Ho, Wo_pad, Cout)
    if Wo_pad != Wo:                 # no-op crop when W is already 8-aligned
        y = y[:, :, :, :Wo, :]
    return y
    # TODO(synk): epilogue/store stay Cout-wide in the lane dim (masked vst for
    # Cout < 128); a fully lane-dense (TN*Cout/128, 128) store would need an
    # in-kernel relayout that costs more than it saves at these channel counts.


# ----------------------------------------------------------------------------
# Trilinear interpolation, align_corners=True (separable, plain-JAX glue)
# ----------------------------------------------------------------------------
def _interp_axis(x, axis, out_size, in_size):
    out_size, in_size = int(out_size), int(in_size)
    if out_size == in_size:
        return x
    if out_size == 1:
        src = jnp.zeros((1,), jnp.float32)
    else:
        src = jnp.arange(out_size, dtype=jnp.float32) * (
            (in_size - 1) / (out_size - 1)
        )
    i0 = jnp.clip(jnp.floor(src).astype(jnp.int32), 0, in_size - 1)
    i1 = jnp.clip(i0 + 1, 0, in_size - 1)
    frac = src - i0.astype(jnp.float32)
    x0 = jnp.take(x, i0, axis=axis)
    x1 = jnp.take(x, i1, axis=axis)
    shape = [1] * x.ndim
    shape[axis] = out_size
    frac = frac.reshape(shape)
    return x0 * (1.0 - frac) + x1 * frac


def trilinear_interp(x, size):
    # x: (B, D, H, W, C) -> (B, size[0], size[1], size[2], C)
    x = _interp_axis(x, 1, size[0], x.shape[1])
    x = _interp_axis(x, 2, size[1], x.shape[2])
    x = _interp_axis(x, 3, size[2], x.shape[3])
    return x


def scale_dimension(dim, scale):
    return int((float(dim) - 1.0) * scale + 1.0) if dim % 2 == 1 else int(float(dim) * scale)


# ----------------------------------------------------------------------------
# Parameters (deterministic synthetic init; BatchNorm folded as eval-mode affine)
# ----------------------------------------------------------------------------
_BN_EPS = 1e-5


def make_convbr_params(key, cin, cout, k):
    fan_in = cin * k * k * k
    w = jax.random.normal(key, (k, k, k, cin, cout), jnp.float32) * float(
        np.sqrt(2.0 / fan_in)
    )
    # eval-mode BN with gamma=1, beta=0, running_mean=0, running_var=1
    scale = jnp.full((1, cout), 1.0 / np.sqrt(1.0 + _BN_EPS), jnp.float32)
    bias = jnp.zeros((1, cout), jnp.float32)
    return {"w": w, "scale": scale, "bias": bias, "pad": (k - 1) // 2}


def convbr(x, p, relu=True):
    return conv3d_bn_act(x, p["w"], p["scale"], p["bias"], padding=p["pad"], relu=relu)


# LEAStereo matching-cell architecture (branch_index, primitive); primitive 1 = 3d_conv_3x3
CELL_ARCH = np.array(
    [[1, 1], [0, 1], [3, 1], [4, 1], [8, 1], [5, 1]], dtype=np.int64
)
# network path: level per layer (all level 1 -> consistent with the fixed skip heads)
NETWORK_PATH = [1] * 12


def network_layer_to_space(net_arch):
    space = None
    prev = None
    for i, layer in enumerate(net_arch):
        s = np.zeros((1, 4, 3))
        if i == 0:
            s[0][layer][0] = 1
        else:
            if layer == prev + 1:
                sample = 0
            elif layer == prev:
                sample = 1
            else:
                sample = 2
            s[0][layer][sample] = 1
        space = s if space is None else np.concatenate([space, s], axis=0)
        prev = layer
    return space


def make_cell_params(key, c_prev_prev, c_prev, c_out, cell_arch):
    keys = jax.random.split(key, 2 + len(cell_arch))
    ops = []
    for i, row in enumerate(cell_arch):
        if int(row[1]) == 1:
            ops.append(make_convbr_params(keys[2 + i], c_out, c_out, 3))
        else:
            ops.append(None)  # skip_connect (Identity)
    return {
        "pre": make_convbr_params(keys[0], c_prev_prev, c_out, 1),
        "prep": make_convbr_params(keys[1], c_prev, c_out, 1),
        "ops": ops,
        "C_out": c_out,
    }


def cell_forward(params, prev_prev_input, prev_input, downup_sample,
                 cell_arch, steps=3, block_multiplier=4):
    s0, s1 = prev_prev_input, prev_input
    c_out = params["C_out"]
    if downup_sample != 0:
        scale = 0.5 if downup_sample == -1 else 2.0
        fd = scale_dimension(s1.shape[1], scale)
        fh = scale_dimension(s1.shape[2], scale)
        fw = scale_dimension(s1.shape[3], scale)
        s1 = trilinear_interp(s1, (fd, fh, fw))
    if s0.shape[1:4] != s1.shape[1:4]:
        s0 = trilinear_interp(s0, s1.shape[1:4])
    if s0.shape[-1] != c_out:
        s0 = convbr(s0, params["pre"])
    s1 = convbr(s1, params["prep"])

    branch_values = set(int(r[0]) for r in cell_arch)
    states = [s0, s1]
    offset = 0
    ops_index = 0
    for _ in range(steps):
        new_states = []
        for j, h in enumerate(states):
            branch_index = offset + j
            if branch_index in branch_values:
                op = params["ops"][ops_index]
                new_state = h if op is None else convbr(h, op)
                new_states.append(new_state)
                ops_index += 1
        s = new_states[0]
        for ns in new_states[1:]:
            s = s + ns
        offset += len(states)
        states.append(s)
    concat_feature = jnp.concatenate(states[-block_multiplier:], axis=-1)
    return (prev_input, concat_feature)


def build_newmatching_params(key):
    network_arch = network_layer_to_space(NETWORK_PATH)  # (12, 4, 3)
    num_layers = 12
    block_multiplier = 4
    filter_multiplier = 8
    initial_fm = filter_multiplier * block_multiplier  # 32
    filter_param_dict = {0: 1, 1: 2, 2: 4, 3: 8}

    keys = jax.random.split(key, num_layers + 8)
    params = {
        "stem0": make_convbr_params(keys[0], initial_fm * 2, initial_fm, 3),
        "stem1": make_convbr_params(keys[1], initial_fm, initial_fm, 3),
        "conv1": make_convbr_params(keys[2], initial_fm * 4, initial_fm * 2, 3),
        "conv2": make_convbr_params(keys[3], initial_fm * 4, initial_fm * 2, 3),
        "last_6": make_convbr_params(keys[4], initial_fm * 2, initial_fm, 1),
    }
    # last_3: plain Conv3d(initial_fm, 1, 3, 1, 1) with bias, no BN, no ReLU.
    # Cout padded 1 -> 8 (zero weights) to avoid a 1-lane MXU/store path; the
    # real output channel is sliced out after the kernel.
    fan_in = initial_fm * 27
    w_last3 = jax.random.normal(keys[5], (3, 3, 3, initial_fm, 1), jnp.float32) * float(
        np.sqrt(1.0 / fan_in)
    )
    b_last3 = jax.random.normal(keys[6], (1, 1), jnp.float32) * 0.01
    params["last_3"] = {
        "w": jnp.pad(w_last3, ((0, 0), (0, 0), (0, 0), (0, 0), (0, 7))),
        "scale": jnp.ones((1, 8), jnp.float32),
        "bias": jnp.pad(b_last3, ((0, 0), (0, 7))),
        "pad": 1,
    }

    cells = []
    downups = []
    for i in range(num_layers):
        level = int(np.argmax(network_arch[i].sum(axis=1)))
        prev_level = int(np.argmax(network_arch[i - 1].sum(axis=1)))
        prev_prev_level = int(np.argmax(network_arch[i - 2].sum(axis=1)))
        if i == 0:
            downup = -int(np.argmax(network_arch[0].sum(axis=1)))
            prev_prev_fm = initial_fm / block_multiplier
            prev_fm = initial_fm / block_multiplier
        else:
            downup = int(np.argmax(network_arch[i].sum(axis=0))) - 1
            if i == 1:
                prev_prev_fm = initial_fm / block_multiplier
                prev_fm = filter_multiplier * filter_param_dict[prev_level]
            else:
                prev_prev_fm = filter_multiplier * filter_param_dict[prev_prev_level]
                prev_fm = filter_multiplier * filter_param_dict[prev_level]
        c_out = filter_multiplier * filter_param_dict[level]
        c_prev = int(block_multiplier * prev_fm)
        c_prev_prev = int(block_multiplier * prev_prev_fm)
        cells.append(make_cell_params(keys[8 + i], c_prev_prev, c_prev, c_out, CELL_ARCH))
        downups.append(downup)
    params["cells"] = cells
    params["downups"] = downups
    return params


def newmatching_forward(params, x):
    """x: (B, D, H, W, 2*initial_fm) channels-last.  Returns (B, D, H, W, 1)."""
    cells = params["cells"]
    downups = params["downups"]

    stem0 = convbr(x, params["stem0"])
    stem1 = convbr(stem0, params["stem1"])

    out0 = cell_forward(cells[0], stem0, stem1, downups[0], CELL_ARCH)
    out1 = cell_forward(cells[1], out0[0], out0[1], downups[1], CELL_ARCH)
    out2 = cell_forward(cells[2], out1[0], out1[1], downups[2], CELL_ARCH)
    out3 = cell_forward(cells[3], out2[0], out2[1], downups[3], CELL_ARCH)
    out4 = cell_forward(cells[4], out3[0], out3[1], downups[4], CELL_ARCH)

    out4_cat = convbr(jnp.concatenate((out1[-1], out4[-1]), axis=-1), params["conv1"])
    out5 = cell_forward(cells[5], out4[0], out4_cat, downups[5], CELL_ARCH)
    out6 = cell_forward(cells[6], out5[0], out5[1], downups[6], CELL_ARCH)
    out7 = cell_forward(cells[7], out6[0], out6[1], downups[7], CELL_ARCH)
    out8 = cell_forward(cells[8], out7[0], out7[1], downups[8], CELL_ARCH)

    out8_cat = convbr(jnp.concatenate((out4[-1], out8[-1]), axis=-1), params["conv2"])
    out9 = cell_forward(cells[9], out8[0], out8_cat, downups[9], CELL_ARCH)
    out10 = cell_forward(cells[10], out9[0], out9[1], downups[10], CELL_ARCH)
    out11 = cell_forward(cells[11], out10[0], out10[1], downups[11], CELL_ARCH)

    last_output = out11[-1]
    mat = convbr(last_output, params["last_6"])
    mat = trilinear_interp(mat, (x.shape[1], x.shape[2], x.shape[3]))
    p3 = params["last_3"]
    mat = conv3d_bn_act(mat, p3["w"], p3["scale"], p3["bias"],
                        padding=p3["pad"], relu=False)[..., :1]
    return mat


if __name__ == "__main__":
    key = jax.random.PRNGKey(0)
    pkey, xkey = jax.random.split(key)

    params = build_newmatching_params(pkey)

    # PyTorch input would be (B, 64, D, H, W); kernel layout is NDHWC.
    B, D, H, W, C = 2, 8, 8, 8, 64
    x = jax.random.normal(xkey, (B, D, H, W, C), jnp.float32)

    out = newmatching_forward(params, x)
    out = jax.block_until_ready(out)

    assert out.shape == (B, D, H, W, 1), out.shape
    assert bool(jnp.all(jnp.isfinite(out)))
    print("KERNEL_OK")
</pallas_src>

<mosaic_0001>
module attributes {stable_mosaic.version = 11 : i64} {
  func.func @_conv_kernel(%arg0: i32, %arg1: i32, %arg2: memref<1x1x80x192xbf16, #tpu.memory_space<vmem>>, %arg3: memref<1x1x80x192xbf16, #tpu.memory_space<vmem>>, %arg4: memref<1x1x80x192xbf16, #tpu.memory_space<vmem>>, %arg5: memref<9x192x32xbf16, #tpu.memory_space<vmem>>, %arg6: memref<1x32xf32, #tpu.memory_space<vmem>>, %arg7: memref<1x32xf32, #tpu.memory_space<vmem>>, %arg8: memref<1x1x64x32xf32, #tpu.memory_space<vmem>>) attributes {dimension_semantics = [#tpu.dimension_semantics<parallel>, #tpu.dimension_semantics<parallel>], iteration_bounds = array<i64: 2, 8>, scalar_prefetch = 0 : i64, scratch_operands = 0 : i64, tpu.core_type = #tpu.core_type<tc>, window_params = [{transform_indices = @transform_0, window_bounds = array<i64: 1, 1, 80, 192>}, {transform_indices = @transform_1, window_bounds = array<i64: 1, 1, 80, 192>}, {transform_indices = @transform_2, window_bounds = array<i64: 1, 1, 80, 192>}, {pipeline_mode = #tpu.pipeline_mode<synchronous>, transform_indices = @transform_3, window_bounds = array<i64: 9, 192, 32>}, {pipeline_mode = #tpu.pipeline_mode<synchronous>, transform_indices = @transform_4, window_bounds = array<i64: 1, 32>}, {pipeline_mode = #tpu.pipeline_mode<synchronous>, transform_indices = @transform_5, window_bounds = array<i64: 1, 32>}, {transform_indices = @transform_6, window_bounds = array<i64: 1, 1, 64, 32>}]} {
    %cst = arith.constant 0.000000e+00 : f32
    %0 = vector.broadcast %cst : f32 to vector<64x32xf32>
    %c0 = arith.constant 0 : index
    %c0_0 = arith.constant 0 : index
    %c0_1 = arith.constant 0 : index
    %c0_2 = arith.constant 0 : index
    %1 = vector.load %arg2[%c0, %c0_0, %c0_1, %c0_2] : memref<1x1x80x192xbf16, #tpu.memory_space<vmem>>, vector<1x1x64x192xbf16>
    %2 = vector.shape_cast %1 : vector<1x1x64x192xbf16> to vector<64x192xbf16>
    %c0_3 = arith.constant 0 : index
    %c0_4 = arith.constant 0 : index
    %c0_5 = arith.constant 0 : index
    %3 = vector.load %arg5[%c0_3, %c0_4, %c0_5] : memref<9x192x32xbf16, #tpu.memory_space<vmem>>, vector<1x192x32xbf16>
    %4 = vector.shape_cast %3 : vector<1x192x32xbf16> to vector<192x32xbf16>
    %cst_6 = arith.constant dense<0.000000e+00> : vector<64x32xf32>
    %5 = tpu.matmul %2, %4, %cst_6 {dimension_numbers = #tpu.dot_dimension_numbers<[1], [0], [0], [1], [0, 0, 1, 1], [], []>} : vector<64x192xbf16>, vector<192x32xbf16>, vector<64x32xf32> -> vector<64x32xf32>
    %6 = arith.addf %0, %5 : vector<64x32xf32>
    %c0_7 = arith.constant 0 : index
    %c0_8 = arith.constant 0 : index
    %c8 = arith.constant 8 : index
    %c0_9 = arith.constant 0 : index
    %7 = vector.load %arg2[%c0_7, %c0_8, %c8, %c0_9] : memref<1x1x80x192xbf16, #tpu.memory_space<vmem>>, vector<1x1x64x192xbf16>
    %8 = vector.shape_cast %7 : vector<1x1x64x192xbf16> to vector<64x192xbf16>
    %c1 = arith.constant 1 : index
    %c0_10 = arith.constant 0 : index
    %c0_11 = arith.constant 0 : index
    %9 = vector.load %arg5[%c1, %c0_10, %c0_11] : memref<9x192x32xbf16, #tpu.memory_space<vmem>>, vector<1x192x32xbf16>
    %10 = vector.shape_cast %9 : vector<1x192x32xbf16> to vector<192x32xbf16>
    %cst_12 = arith.constant dense<0.000000e+00> : vector<64x32xf32>
    %11 = tpu.matmul %8, %10, %cst_12 {dimension_numbers = #tpu.dot_dimension_numbers<[1], [0], [0], [1], [0, 0, 1, 1], [], []>} : vector<64x192xbf16>, vector<192x32xbf16>, vector<64x32xf32> -> vector<64x32xf32>
    %12 = arith.addf %6, %11 : vector<64x32xf32>
    %c0_13 = arith.constant 0 : index
    %c0_14 = arith.constant 0 : index
    %c16 = arith.constant 16 : index
    %c0_15 = arith.constant 0 : index
    %13 = vector.load %arg2[%c0_13, %c0_14, %c16, %c0_15] : memref<1x1x80x192xbf16, #tpu.memory_space<vmem>>, vector<1x1x64x192xbf16>
    %14 = vector.shape_cast %13 : vector<1x1x64x192xbf16> to vector<64x192xbf16>
    %c2 = arith.constant 2 : index
    %c0_16 = arith.constant 0 : index
    %c0_17 = arith.constant 0 : index
    %15 = vector.load %arg5[%c2, %c0_16, %c0_17] : memref<9x192x32xbf16, #tpu.memory_space<vmem>>, vector<1x192x32xbf16>
    %16 = vector.shape_cast %15 : vector<1x192x32xbf16> to vector<192x32xbf16>
    %cst_18 = arith.constant dense<0.000000e+00> : vector<64x32xf32>
    %17 = tpu.matmul %14, %16, %cst_18 {dimension_numbers = #tpu.dot_dimension_numbers<[1], [0], [0], [1], [0, 0, 1, 1], [], []>} : vector<64x192xbf16>, vector<192x32xbf16>, vector<64x32xf32> -> vector<64x32xf32>
    %18 = arith.addf %12, %17 : vector<64x32xf32>
    %c0_19 = arith.constant 0 : index
    %c0_20 = arith.constant 0 : index
    %c0_21 = arith.constant 0 : index
    %c0_22 = arith.constant 0 : index
    %19 = vector.load %arg3[%c0_19, %c0_20, %c0_21, %c0_22] : memref<1x1x80x192xbf16, #tpu.memory_space<vmem>>, vector<1x1x64x192xbf16>
    %20 = vector.shape_cast %19 : vector<1x1x64x192xbf16> to vector<64x192xbf16>
    %c3 = arith.constant 3 : index
    %c0_23 = arith.constant 0 : index
    %c0_24 = arith.constant 0 : index
    %21 = vector.load %arg5[%c3, %c0_23, %c0_24] : memref<9x192x32xbf16, #tpu.memory_space<vmem>>, vector<1x192x32xbf16>
    %22 = vector.shape_cast %21 : vector<1x192x32xbf16> to vector<192x32xbf16>
    %cst_25 = arith.constant dense<0.000000e+00> : vector<64x32xf32>
    %23 = tpu.matmul %20, %22, %cst_25 {dimension_numbers = #tpu.dot_dimension_numbers<[1], [0], [0], [1], [0, 0, 1, 1], [], []>} : vector<64x192xbf16>, vector<192x32xbf16>, vector<64x32xf32> -> vector<64x32xf32>
    %24 = arith.addf %18, %23 : vector<64x32xf32>
    %c0_26 = arith.constant 0 : index
    %c0_27 = arith.constant 0 : index
    %c8_28 = arith.constant 8 : index
    %c0_29 = arith.constant 0 : index
    %25 = vector.load %arg3[%c0_26, %c0_27, %c8_28, %c0_29] : memref<1x1x80x192xbf16, #tpu.memory_space<vmem>>, vector<1x1x64x192xbf16>
    %26 = vector.shape_cast %25 : vector<1x1x64x192xbf16> to vector<64x192xbf16>
    %c4 = arith.constant 4 : index
    %c0_30 = arith.constant 0 : index
    %c0_31 = arith.constant 0 : index
    %27 = vector.load %arg5[%c4, %c0_30, %c0_31] : memref<9x192x32xbf16, #tpu.memory_space<vmem>>, vector<1x192x32xbf16>
    %28 = vector.shape_cast %27 : vector<1x192x32xbf16> to vector<192x32xbf16>
    %cst_32 = arith.constant dense<0.000000e+00> : vector<64x32xf32>
    %29 = tpu.matmul %26, %28, %cst_32 {dimension_numbers = #tpu.dot_dimension_numbers<[1], [0], [0], [1], [0, 0, 1, 1], [], []>} : vector<64x192xbf16>, vector<192x32xbf16>, vector<64x32xf32> -> vector<64x32xf32>
    %30 = arith.addf %24, %29 : vector<64x32xf32>
    %c0_33 = arith.constant 0 : index
    %c0_34 = arith.constant 0 : index
    %c16_35 = arith.constant 16 : index
    %c0_36 = arith.constant 0 : index
    %31 = vector.load %arg3[%c0_33, %c0_34, %c16_35, %c0_36] : memref<1x1x80x192xbf16, #tpu.memory_space<vmem>>, vector<1x1x64x192xbf16>
    %32 = vector.shape_cast %31 : vector<1x1x64x192xbf16> to vector<64x192xbf16>
    %c5 = arith.constant 5 : index
    %c0_37 = arith.constant 0 : index
    %c0_38 = arith.constant 0 : index
    %33 = vector.load %arg5[%c5, %c0_37, %c0_38] : memref<9x192x32xbf16, #tpu.memory_space<vmem>>, vector<1x192x32xbf16>
    %34 = vector.shape_cast %33 : vector<1x192x32xbf16> to vector<192x32xbf16>
    %cst_39 = arith.constant dense<0.000000e+00> : vector<64x32xf32>
    %35 = tpu.matmul %32, %34, %cst_39 {dimension_numbers = #tpu.dot_dimension_numbers<[1], [0], [0], [1], [0, 0, 1, 1], [], []>} : vector<64x192xbf16>, vector<192x32xbf16>, vector<64x32xf32> -> vector<64x32xf32>
    %36 = arith.addf %30, %35 : vector<64x32xf32>
    %c0_40 = arith.constant 0 : index
    %c0_41 = arith.constant 0 : index
    %c0_42 = arith.constant 0 : index
    %c0_43 = arith.constant 0 : index
    %37 = vector.load %arg4[%c0_40, %c0_41, %c0_42, %c0_43] : memref<1x1x80x192xbf16, #tpu.memory_space<vmem>>, vector<1x1x64x192xbf16>
    %38 = vector.shape_cast %37 : vector<1x1x64x192xbf16> to vector<64x192xbf16>
    %c6 = arith.constant 6 : index
    %c0_44 = arith.constant 0 : index
    %c0_45 = arith.constant 0 : index
    %39 = vector.load %arg5[%c6, %c0_44, %c0_45] : memref<9x192x32xbf16, #tpu.memory_space<vmem>>, vector<1x192x32xbf16>
    %40 = vector.shape_cast %39 : vector<1x192x32xbf16> to vector<192x32xbf16>
    %cst_46 = arith.constant dense<0.000000e+00> : vector<64x32xf32>
    %41 = tpu.matmul %38, %40, %cst_46 {dimension_numbers = #tpu.dot_dimension_numbers<[1], [0], [0], [1], [0, 0, 1, 1], [], []>} : vector<64x192xbf16>, vector<192x32xbf16>, vector<64x32xf32> -> vector<64x32xf32>
    %42 = arith.addf %36, %41 : vector<64x32xf32>
    %c0_47 = arith.constant 0 : index
    %c0_48 = arith.constant 0 : index
    %c8_49 = arith.constant 8 : index
    %c0_50 = arith.constant 0 : index
    %43 = vector.load %arg4[%c0_47, %c0_48, %c8_49, %c0_50] : memref<1x1x80x192xbf16, #tpu.memory_space<vmem>>, vector<1x1x64x192xbf16>
    %44 = vector.shape_cast %43 : vector<1x1x64x192xbf16> to vector<64x192xbf16>
    %c7 = arith.constant 7 : index
    %c0_51 = arith.constant 0 : index
    %c0_52 = arith.constant 0 : index
    %45 = vector.load %arg5[%c7, %c0_51, %c0_52] : memref<9x192x32xbf16, #tpu.memory_space<vmem>>, vector<1x192x32xbf16>
    %46 = vector.shape_cast %45 : vector<1x192x32xbf16> to vector<192x32xbf16>
    %cst_53 = arith.constant dense<0.000000e+00> : vector<64x32xf32>
    %47 = tpu.matmul %44, %46, %cst_53 {dimension_numbers = #tpu.dot_dimension_numbers<[1], [0], [0], [1], [0, 0, 1, 1], [], []>} : vector<64x192xbf16>, vector<192x32xbf16>, vector<64x32xf32> -> vector<64x32xf32>
    %48 = arith.addf %42, %47 : vector<64x32xf32>
    %c0_54 = arith.constant 0 : index
    %c0_55 = arith.constant 0 : index
    %c16_56 = arith.constant 16 : index
    %c0_57 = arith.constant 0 : index
    %49 = vector.load %arg4[%c0_54, %c0_55, %c16_56, %c0_57] : memref<1x1x80x192xbf16, #tpu.memory_space<vmem>>, vector<1x1x64x192xbf16>
    %50 = vector.shape_cast %49 : vector<1x1x64x192xbf16> to vector<64x192xbf16>
    %c8_58 = arith.constant 8 : index
    %c0_59 = arith.constant 0 : index
    %c0_60 = arith.constant 0 : index
    %51 = vector.load %arg5[%c8_58, %c0_59, %c0_60] : memref<9x192x32xbf16, #tpu.memory_space<vmem>>, vector<1x192x32xbf16>
    %52 = vector.shape_cast %51 : vector<1x192x32xbf16> to vector<192x32xbf16>
    %cst_61 = arith.constant dense<0.000000e+00> : vector<64x32xf32>
    %53 = tpu.matmul %50, %52, %cst_61 {dimension_numbers = #tpu.dot_dimension_numbers<[1], [0], [0], [1], [0, 0, 1, 1], [], []>} : vector<64x192xbf16>, vector<192x32xbf16>, vector<64x32xf32> -> vector<64x32xf32>
    %54 = arith.addf %48, %53 : vector<64x32xf32>
    %c0_62 = arith.constant 0 : index
    %c0_63 = arith.constant 0 : index
    %55 = vector.load %arg6[%c0_62, %c0_63] : memref<1x32xf32, #tpu.memory_space<vmem>>, vector<1x32xf32>
    %56 = vector.broadcast %55 : vector<1x32xf32> to vector<64x32xf32>
    %57 = arith.mulf %54, %56 : vector<64x32xf32>
    %c0_64 = arith.constant 0 : index
    %c0_65 = arith.constant 0 : index
    %58 = vector.load %arg7[%c0_64, %c0_65] : memref<1x32xf32, #tpu.memory_space<vmem>>, vector<1x32xf32>
    %59 = vector.broadcast %58 : vector<1x32xf32> to vector<64x32xf32>
    %60 = arith.addf %57, %59 : vector<64x32xf32>
    %cst_66 = arith.constant 0.000000e+00 : f32
    %61 = vector.broadcast %cst_66 : f32 to vector<64x32xf32>
    %62 = arith.maximumf %60, %61 : vector<64x32xf32>
    %c0_67 = arith.constant 0 : index
    %c0_68 = arith.constant 0 : index
    %c0_69 = arith.constant 0 : index
    %c0_70 = arith.constant 0 : index
    %63 = vector.load %arg8[%c0_67, %c0_68, %c0_69, %c0_70] : memref<1x1x64x32xf32, #tpu.memory_space<vmem>>, vector<1x1x64x32xf32>
    %64 = vector.shape_cast %63 : vector<1x1x64x32xf32> to vector<64x32xf32>
    %65 = vector.shape_cast %62 : vector<64x32xf32> to vector<1x1x64x32xf32>
    tpu.vector_store %arg8[%c0_67, %c0_68, %c0_69, %c0_70], %65 {strides = array<i32>} : memref<1x1x64x32xf32, #tpu.memory_space<vmem>>, vector<1x1x64x32xf32>,
    return
  }
  func.func @transform_0(%arg0: i32, %arg1: i32) -> (i32, i32, i32, i32) {
    %c0_i32 = arith.constant 0 : i32
    %0 = arith.addi %arg1, %c0_i32 : i32
    %c0_i32_0 = arith.constant 0 : i32
    %c0_i32_1 = arith.constant 0 : i32
    %c0_i32_2 = arith.constant 0 : i32
    return %arg0, %0, %c0_i32_0, %c0_i32_1 : i32, i32, i32, i32
  }
  func.func @transform_1(%arg0: i32, %arg1: i32) -> (i32, i32, i32, i32) {
    %c1_i32 = arith.constant 1 : i32
    %0 = arith.addi %arg1, %c1_i32 : i32
    %c0_i32 = arith.constant 0 : i32
    %c0_i32_0 = arith.constant 0 : i32
    %c0_i32_1 = arith.constant 0 : i32
    return %arg0, %0, %c0_i32, %c0_i32_0 : i32, i32, i32, i32
  }
  func.func @transform_2(%arg0: i32, %arg1: i32) -> (i32, i32, i32, i32) {
    %c2_i32 = arith.constant 2 : i32
    %0 = arith.addi %arg1, %c2_i32 : i32
    %c0_i32 = arith.constant 0 : i32
    %c0_i32_0 = arith.constant 0 : i32
    %c0_i32_1 = arith.constant 0 : i32
    return %arg0, %0, %c0_i32, %c0_i32_0 : i32, i32, i32, i32
  }
  func.func @transform_3(%arg0: i32, %arg1: i32) -> (i32, i32, i32) {
    %c0_i32 = arith.constant 0 : i32
    %c0_i32_0 = arith.constant 0 : i32
    %c0_i32_1 = arith.constant 0 : i32
    %c0_i32_2 = arith.constant 0 : i32
    return %c0_i32, %c0_i32_0, %c0_i32_1 : i32, i32, i32
  }
  func.func @transform_4(%arg0: i32, %arg1: i32) -> (i32, i32) {
    %c0_i32 = arith.constant 0 : i32
    %c0_i32_0 = arith.constant 0 : i32
    %c0_i32_1 = arith.constant 0 : i32
    return %c0_i32, %c0_i32_0 : i32, i32
  }
  func.func @transform_5(%arg0: i32, %arg1: i32) -> (i32, i32) {
    %c0_i32 = arith.constant 0 : i32
    %c0_i32_0 = arith.constant 0 : i32
    %c0_i32_1 = arith.constant 0 : i32
    return %c0_i32, %c0_i32_0 : i32, i32
  }
  func.func @transform_6(%arg0: i32, %arg1: i32) -> (i32, i32, i32, i32) {
    %c0_i32 = arith.constant 0 : i32
    %c0_i32_0 = arith.constant 0 : i32
    %c0_i32_1 = arith.constant 0 : i32
    return %arg0, %arg1, %c0_i32, %c0_i32_0 : i32, i32, i32, i32
  }
}

</mosaic_0001>

<llo_original>
// kernel: tpu_custom_call.1
$region0: #{tpu_custom_call.1}
  #allocation0 [shape = 'u32[]', space=smem, size = 0x4, offset = 0x4, fixed_abs, tag = 'smem constant byte address 0x4 - core index']
  #allocation1 [shape = 'u32[144,128]{1,0:T(1,128)}', space=vmem, size = 0x12000, scoped, tag = 'internal scratch']
  %s0 = inlined_call_operand.hbm [shape: bf16[2,10,80,192], index: 0, kind: input, shape index: {}]
  %s1 = inlined_call_operand.hbm [shape: bf16[2,10,80,192], index: 1, kind: input, shape index: {}]
  %s2 = inlined_call_operand.hbm [shape: bf16[2,10,80,192], index: 2, kind: input, shape index: {}]
  %s3 = inlined_call_operand.vmem [shape: bf16[9,192,32], index: 3, kind: input, shape index: {}]
  %s4 = inlined_call_operand.vmem [shape: f32[1,32], index: 4, kind: input, shape index: {}]
  %s5 = inlined_call_operand.vmem [shape: f32[1,32], index: 5, kind: input, shape index: {}]
  %s6 = inlined_call_operand.vmem [shape: f32[2,8,64,32], index: 6, kind: output, shape index: {}]
  %s7 = sld [smem:[#allocation0]]
  $region69: #{tpu_custom_call.1} parent=0
    _
  %s9 = ssub.s32 1, %s7
  %s10 = scalar_select 0, %s9, %s7
  $region1: #{tpu_custom_call.1} parent=0
    #allocation2 [shape = 'u8[81920]{0}', space=vmem, size = 0x14000, scoped, tag = 'input window, operand 0']
    #allocation3 [shape = 's32[2]{0}', space=sflag, size = 0x8, scoped, tag = 'scoped memory for tpu_custom_call.1']
    #allocation4 [shape = 'u8[81920]{0}', space=vmem, size = 0x14000, scoped, tag = 'input window, operand 1']
    #allocation5 [shape = 's32[2]{0}', space=sflag, size = 0x8, scoped, tag = 'scoped memory for tpu_custom_call.1']
    #allocation6 [shape = 'u8[81920]{0}', space=vmem, size = 0x14000, scoped, tag = 'input window, operand 2']
    %11 = vsyncpa [#allocation3], 0
    %s12 = scalar_lea.sflag [#allocation3], 1
    %13 = vsyncpa %s12, 0
    %14 = vsyncpa [#allocation5], 0
    %s15 = scalar_lea.sflag [#allocation5], 1
    %16 = vsyncpa %s15, 0
    loop: start=0, step=1, limit=18
    $region2: #{tpu_custom_call.1} parent=1 // loop_pre_header
      _
    $region3: #{tpu_custom_call.1} parent=1 // loop_header
      %s18 = sphi 0, %s22
      %p19 = scmp.ge.s32.totalorder %s18, 18
      %s25 = sphi 0, %s37
      %s26 = sphi 0, %s33
      %s27 = sphi 0, %s25
      %s28 = sphi 0, %s26
      %s29 = sphi 0, %s27
      %s30 = sphi 0, %s28
      %s42 = sphi 0, %s44
      %s45 = sphi 0, %s42
      %s46 = sphi 0, %s45
      %s62 = sphi 0, %s46
      %s72 = sphi 0, %s74
      %s75 = sphi 0, %s72
      %s76 = sphi 0, %s75
      %s92 = sphi 0, %s76
      %s102 = sphi 0, %s104
      %s105 = sphi 0, %s102
      %s106 = sphi 0, %s105
      %s122 = sphi 0, %s106
      %s126 = sphi 0, %s126
      %s128 = sphi 0, %s126
      %s129 = sphi 0, %s128
      %s143 = sphi 0, %s129
      %s147 = sphi 0, %s147
      %s149 = sphi 0, %s147
      %s150 = sphi 0, %s149
      %s164 = sphi 0, %s150
      %s168 = sphi 0, %s168
      %s170 = sphi 0, %s168
      %s171 = sphi 0, %s170
      %s185 = sphi 0, %s171
      %s193 = sphi 0, %s195
      %s196 = sphi 0, %s193
      %s197 = sphi 0, %s196
      %s213 = sphi 0, %s197
    $region4: #{tpu_custom_call.1} parent=1 // loop_header_branch
      %21 = sbr.rel (%p19) target = $region8
    $region5: #{tpu_custom_call.1} parent=1 // loop_body
      %s23 = ssub.s32 %s18, 1
      %s24 = ssub.s32 %s18, 2
      %s31 = sadd.s32 1, %s26
      %p32 = scmp.ge.s32.totalorder %s31, 8
      %s33 = scalar_select %p32, 0, %s31
      %s34 = sadd.s32 1, %s25
      %s35 = scalar_select %p32, %s34, %s25
      %p36 = scmp.ge.s32.totalorder %s35, 2
      %s37 = scalar_select %p36, 0, %s35
      %s38 = ssub.s32 %s25, %s37
      %s39 = ssub.s32 %s26, %s33
      %s40 = sor.u32 %s38, %s39
      %p41 = scmp.eq.s32.totalorder %s40, 0
      %s43 = sadd.s32 %s42, 1
      %s44 = scalar_select %p41, %s42, %s43
      %p47 = pneg %p41
      %p48 = scmp.eq.s32.totalorder %s18, 15
      %p49 = por %p47, %p48
      %p50 = scmp.ne.s32.totalorder %s42, %s45
      %p51 = scmp.eq.s32.totalorder %s18, 0
      %p52 = por %p50, %p51
      %p53 = scmp.ne.s32.totalorder %s42, %s45
      %p54 = scmp.eq.s32.totalorder %s23, 15
      %p55 = por %p53, %p54
      %p56 = scmp.ne.s32.totalorder %s45, %s46
      %p57 = scmp.eq.s32.totalorder %s23, 0
      %p58 = por %p56, %p57
      %p59 = scmp.ne.s32.totalorder %s45, %s46
      %p60 = scmp.eq.s32.totalorder %s24, 15
      %p61 = por %p59, %p60
      %p63 = scmp.ne.s32.totalorder %s46, %s62
      %p64 = scmp.eq.s32.totalorder %s24, 0
      %p65 = por %p63, %p64
      %s66 = sadd.s32 %s26, 1
      %s67 = sadd.s32 %s33, 1
      %s68 = ssub.s32 %s25, %s37
      %s69 = ssub.s32 %s66, %s67
      %s70 = sor.u32 %s68, %s69
      %p71 = scmp.eq.s32.totalorder %s70, 0
      %s73 = sadd.s32 %s72, 1
      %s74 = scalar_select %p71, %s72, %s73
      %p77 = pneg %p71
      %p78 = scmp.eq.s32.totalorder %s18, 15
      %p79 = por %p77, %p78
      %p80 = scmp.ne.s32.totalorder %s72, %s75
      %p81 = scmp.eq.s32.totalorder %s18, 0
      %p82 = por %p80, %p81
      %p83 = scmp.ne.s32.totalorder %s72, %s75
      %p84 = scmp.eq.s32.totalorder %s23, 15
      %p85 = por %p83, %p84
      %p86 = scmp.ne.s32.totalorder %s75, %s76
      %p87 = scmp.eq.s32.totalorder %s23, 0
      %p88 = por %p86, %p87
      %p89 = scmp.ne.s32.totalorder %s75, %s76
      %p90 = scmp.eq.s32.totalorder %s24, 15
      %p91 = por %p89, %p90
      %p93 = scmp.ne.s32.totalorder %s76, %s92
      %p94 = scmp.eq.s32.totalorder %s24, 0
      %p95 = por %p93, %p94
      %s96 = sadd.s32 %s26, 2
      %s97 = sadd.s32 %s33, 2
      %s98 = ssub.s32 %s25, %s37
      %s99 = ssub.s32 %s96, %s97
      %s100 = sor.u32 %s98, %s99
      %p101 = scmp.eq.s32.totalorder %s100, 0
      %s103 = sadd.s32 %s102, 1
      %s104 = scalar_select %p101, %s102, %s103
      %p107 = pneg %p101
      %p108 = scmp.eq.s32.totalorder %s18, 15
      %p109 = por %p107, %p108
      %p110 = scmp.ne.s32.totalorder %s102, %s105
      %p111 = scmp.eq.s32.totalorder %s18, 0
      %p112 = por %p110, %p111
      %p113 = scmp.ne.s32.totalorder %s102, %s105
      %p114 = scmp.eq.s32.totalorder %s23, 15
      %p115 = por %p113, %p114
      %p116 = scmp.ne.s32.totalorder %s105, %s106
      %p117 = scmp.eq.s32.totalorder %s23, 0
      %p118 = por %p116, %p117
      %p119 = scmp.ne.s32.totalorder %s105, %s106
      %p120 = scmp.eq.s32.totalorder %s24, 15
      %p121 = por %p119, %p120
      %p123 = scmp.ne.s32.totalorder %s106, %s122
      %p124 = scmp.eq.s32.totalorder %s24, 0
      %p125 = por %p123, %p124
      %s127 = sadd.s32 %s126, 1
      %p130 = scmp.eq.s32.totalorder %s18, 15
      %p131 = scmp.ne.s32.totalorder %s126, %s128
      %p132 = scmp.eq.s32.totalorder %s18, 0
      %p133 = por %p131, %p132
      %p134 = scmp.ne.s32.totalorder %s126, %s128
      %p135 = scmp.eq.s32.totalorder %s23, 15
      %p136 = por %p134, %p135
      %p137 = scmp.ne.s32.totalorder %s128, %s129
      %p138 = scmp.eq.s32.totalorder %s23, 0
      %p139 = por %p137, %p138
      %p140 = scmp.ne.s32.totalorder %s128, %s129
      %p141 = scmp.eq.s32.totalorder %s24, 15
      %p142 = por %p140, %p141
      %p144 = scmp.ne.s32.totalorder %s129, %s143
      %p145 = scmp.eq.s32.totalorder %s24, 0
      %p146 = por %p144, %p145
      %s148 = sadd.s32 %s147, 1
      %p151 = scmp.eq.s32.totalorder %s18, 15
      %p152 = scmp.ne.s32.totalorder %s147, %s149
      %p153 = scmp.eq.s32.totalorder %s18, 0
      %p154 = por %p152, %p153
      %p155 = scmp.ne.s32.totalorder %s147, %s149
      %p156 = scmp.eq.s32.totalorder %s23, 15
      %p157 = por %p155, %p156
      %p158 = scmp.ne.s32.totalorder %s149, %s150
      %p159 = scmp.eq.s32.totalorder %s23, 0
      %p160 = por %p158, %p159
      %p161 = scmp.ne.s32.totalorder %s149, %s150
      %p162 = scmp.eq.s32.totalorder %s24, 15
      %p163 = por %p161, %p162
      %p165 = scmp.ne.s32.totalorder %s150, %s164
      %p166 = scmp.eq.s32.totalorder %s24, 0
      %p167 = por %p165, %p166
      %s169 = sadd.s32 %s168, 1
      %p172 = scmp.eq.s32.totalorder %s18, 15
      %p173 = scmp.ne.s32.totalorder %s168, %s170
      %p174 = scmp.eq.s32.totalorder %s18, 0
      %p175 = por %p173, %p174
      %p176 = scmp.ne.s32.totalorder %s168, %s170
      %p177 = scmp.eq.s32.totalorder %s23, 15
      %p178 = por %p176, %p177
      %p179 = scmp.ne.s32.totalorder %s170, %s171
      %p180 = scmp.eq.s32.totalorder %s23, 0
      %p181 = por %p179, %p180
      %p182 = scmp.ne.s32.totalorder %s170, %s171
      %p183 = scmp.eq.s32.totalorder %s24, 15
      %p184 = por %p182, %p183
      %p186 = scmp.ne.s32.totalorder %s171, %s185
      %p187 = scmp.eq.s32.totalorder %s24, 0
      %p188 = por %p186, %p187
      %s189 = ssub.s32 %s25, %s37
      %s190 = ssub.s32 %s26, %s33
      %s191 = sor.u32 %s189, %s190
      %p192 = scmp.eq.s32.totalorder %s191, 0
      %s194 = sadd.s32 %s193, 1
      %s195 = scalar_select %p192, %s193, %s194
      %p198 = pneg %p192
      %p199 = scmp.eq.s32.totalorder %s18, 15
      %p200 = por %p198, %p199
      %p201 = scmp.ne.s32.totalorder %s193, %s196
      %p202 = scmp.eq.s32.totalorder %s18, 0
      %p203 = por %p201, %p202
      %p204 = scmp.ne.s32.totalorder %s193, %s196
      %p205 = scmp.eq.s32.totalorder %s23, 15
      %p206 = por %p204, %p205
      %p207 = scmp.ne.s32.totalorder %s196, %s197
      %p208 = scmp.eq.s32.totalorder %s23, 0
      %p209 = por %p207, %p208
      %p210 = scmp.ne.s32.totalorder %s196, %s197
      %p211 = scmp.eq.s32.totalorder %s24, 15
      %p212 = por %p210, %p211
      %p214 = scmp.ne.s32.totalorder %s197, %s213
      %p215 = scmp.eq.s32.totalorder %s24, 0
      %p216 = por %p214, %p215
      %p217 = scmp.le.s32.totalorder 1, %s18
      %p218 = scmp.lt.s32.totalorder %s18, 17
      %p219 = pnand %p217, %p218
      %p220 = pneg %p219
      // Predicated region
      $region9: #{tpu_custom_call.1} parent=5 // pred_check
        _
      $region10: #{tpu_custom_call.1} parent=5 // pred_check_branch
        %222 = sbr.rel (%p219) target = $region12
      $region11: #{tpu_custom_call.1} parent=5 // pred_region
        %s223 = ssub.s32 %s18, 1
        // Predicated region
        $region13: #{tpu_custom_call.1} parent=11 // pred_check
          %p224 = pneg %p139
        $region14: #{tpu_custom_call.1} parent=11 // pred_check_branch
          %226 = sbr.rel (%p224) target = $region16
        $region15: #{tpu_custom_call.1} parent=11 // pred_region
          _
        $region16: #{tpu_custom_call.1} parent=11 // pred_fallthru
          _
        // Predicated region
        $region17: #{tpu_custom_call.1} parent=11 // pred_check
          %p227 = pneg %p160
        $region18: #{tpu_custom_call.1} parent=11 // pred_check_branch
          %229 = sbr.rel (%p227) target = $region20
        $region19: #{tpu_custom_call.1} parent=11 // pred_region
          _
        $region20: #{tpu_custom_call.1} parent=11 // pred_fallthru
          _
        // Predicated region
        $region21: #{tpu_custom_call.1} parent=11 // pred_check
          %p230 = pneg %p181
        $region22: #{tpu_custom_call.1} parent=11 // pred_check_branch
          %232 = sbr.rel (%p230) target = $region24
        $region23: #{tpu_custom_call.1} parent=11 // pred_region
          _
        $region24: #{tpu_custom_call.1} parent=11 // pred_fallthru
          _
      $region12: #{tpu_custom_call.1} parent=5 // pred_fallthru
        _
      %p233 = scmp.lt.s32.totalorder %s18, 16
      // Predicated region
      $region25: #{tpu_custom_call.1} parent=5 // pred_check
        %p234 = pneg %p233
      $region26: #{tpu_custom_call.1} parent=5 // pred_check_branch
        %236 = sbr.rel (%p234) target = $region28
      $region27: #{tpu_custom_call.1} parent=5 // pred_region
        // Predicated region
        $region29: #{tpu_custom_call.1} parent=27 // pred_check
          %p237 = pneg %p52
        $region30: #{tpu_custom_call.1} parent=27 // pred_check_branch
          %239 = sbr.rel (%p237) target = $region32
        $region31: #{tpu_custom_call.1} parent=27 // pred_region
          %s240 = sand.u32 %s42, 1
          %s241 = scalar_lea.sflag [#allocation3], %s240
          %s242 = sand.u32 %s42, 1
          %s243 = smul.addr %s242, 80
          %s244 = scalar_lea.vmem [#allocation2], %s243
          %s246 = ssub.s32 1280, 1280
          %247 = vsyncadd %s241, %s246
          %s248 = smul.addr %s26, 20
          %s249 = smul.addr %s25, 200
          %s250 = sadd.s32 %s248, %s249
          %s251 = smul.addr %s250, 64
          %s252 = scalar_lea.hbm %s0, %s251
          %s253 = sshll.u32 %s244, 4
          %s254 = int_to_ptr.vmem [resolvable:$true] %s253
          %259 = dma.hbm_to_vmem [thread:$0]  %s252, 1280, %s254, %s241, 128, 128, 8
        $region32: #{tpu_custom_call.1} parent=27 // pred_fallthru
          _
        // Predicated region
        $region33: #{tpu_custom_call.1} parent=27 // pred_check
          %p260 = pneg %p82
        $region34: #{tpu_custom_call.1} parent=27 // pred_check_branch
          %262 = sbr.rel (%p260) target = $region36
        $region35: #{tpu_custom_call.1} parent=27 // pred_region
          %s263 = sand.u32 %s18, 1
          %s264 = scalar_lea.sflag [#allocation5], %s263
          %s265 = sand.u32 %s72, 1
          %s266 = smul.addr %s265, 80
          %s267 = scalar_lea.vmem [#allocation4], %s266
          %s268 = sadd.s32 %s26, 1
          %s270 = ssub.s32 1280, 1280
          %271 = vsyncadd %s264, %s270
          %s272 = smul.addr %s268, 20
          %s273 = smul.addr %s25, 200
          %s274 = sadd.s32 %s272, %s273
          %s275 = smul.addr %s274, 64
          %s276 = scalar_lea.hbm %s1, %s275
          %s277 = sshll.u32 %s267, 4
          %s278 = int_to_ptr.vmem [resolvable:$true] %s277
          %283 = dma.hbm_to_vmem [thread:$0]  %s276, 1280, %s278, %s264, 128, 128, 8
        $region36: #{tpu_custom_call.1} parent=27 // pred_fallthru
          _
        // Predicated region
        $region37: #{tpu_custom_call.1} parent=27 // pred_check
          %p284 = pneg %p112
        $region38: #{tpu_custom_call.1} parent=27 // pred_check_branch
          %286 = sbr.rel (%p284) target = $region40
        $region39: #{tpu_custom_call.1} parent=27 // pred_region
          %s287 = sand.u32 %s18, 1
          %s288 = scalar_lea.sflag [#allocation5], %s287
          %s289 = sand.u32 %s102, 1
          %s290 = smul.addr %s289, 80
          %s291 = scalar_lea.vmem [#allocation6], %s290
          %s292 = sadd.s32 %s26, 2
          %s294 = ssub.s32 1280, 1280
          %295 = vsyncadd %s288, %s294
          %s296 = smul.addr %s292, 20
          %s297 = smul.addr %s25, 200
          %s298 = sadd.s32 %s296, %s297
          %s299 = smul.addr %s298, 64
          %s300 = scalar_lea.hbm %s2, %s299
          %s301 = sshll.u32 %s291, 4
          %s302 = int_to_ptr.vmem [resolvable:$true] %s301
          %307 = dma.hbm_to_vmem [thread:$0]  %s300, 1280, %s302, %s288, 128, 128, 8
        $region40: #{tpu_custom_call.1} parent=27 // pred_fallthru
          _
      $region28: #{tpu_custom_call.1} parent=5 // pred_fallthru
        _
      %p308 = scmp.le.s32.totalorder 1, %s18
      %p309 = scmp.lt.s32.totalorder %s18, 17
      %p310 = pnand %p308, %p309
      %p311 = pneg %p310
      // Predicated region
      $region41: #{tpu_custom_call.1} parent=5 // pred_check
        _
      $region42: #{tpu_custom_call.1} parent=5 // pred_check_branch
        %313 = sbr.rel (%p310) target = $region44
      $region43: #{tpu_custom_call.1} parent=5 // pred_region
        %s314 = ssub.s32 %s18, 1
        %s315 = sand.u32 %s45, 1
        %s316 = scalar_lea.sflag [#allocation3], %s315
        %s317 = sand.u32 %s45, 1
        %s318 = smul.addr %s317, 80
        %s319 = scalar_lea.vmem [#allocation2], %s318
        // Predicated region
        $region45: #{tpu_custom_call.1} parent=43 // pred_check
          %p320 = pneg %p58
        $region46: #{tpu_custom_call.1} parent=43 // pred_check_branch
          %322 = sbr.rel (%p320) target = $region48
        $region47: #{tpu_custom_call.1} parent=43 // pred_region
          %323 = dma.done %s316, 1280
        $region48: #{tpu_custom_call.1} parent=43 // pred_fallthru
          _
        %s324 = sand.u32 %s23, 1
        %s325 = scalar_lea.sflag [#allocation5], %s324
        %s326 = sand.u32 %s75, 1
        %s327 = smul.addr %s326, 80
        %s328 = scalar_lea.vmem [#allocation4], %s327
        // Predicated region
        $region49: #{tpu_custom_call.1} parent=43 // pred_check
          %p329 = pneg %p88
        $region50: #{tpu_custom_call.1} parent=43 // pred_check_branch
          %331 = sbr.rel (%p329) target = $region52
        $region51: #{tpu_custom_call.1} parent=43 // pred_region
          %332 = dma.done %s325, 1280
        $region52: #{tpu_custom_call.1} parent=43 // pred_fallthru
          _
        %s333 = sand.u32 %s23, 1
        %s334 = scalar_lea.sflag [#allocation5], %s333
        %s335 = sand.u32 %s105, 1
        %s336 = smul.addr %s335, 80
        %s337 = scalar_lea.vmem [#allocation6], %s336
        // Predicated region
        $region53: #{tpu_custom_call.1} parent=43 // pred_check
          %p338 = pneg %p118
        $region54: #{tpu_custom_call.1} parent=43 // pred_check_branch
          %340 = sbr.rel (%p338) target = $region56
        $region55: #{tpu_custom_call.1} parent=43 // pred_region
          %341 = dma.done %s334, 1280
        $region56: #{tpu_custom_call.1} parent=43 // pred_fallthru
          _
        %s342 = sand.u32 %s45, 1
        %s343 = scalar_lea.sflag [#allocation3], %s342
        %s344 = sand.u32 %s45, 1
        %s345 = smul.addr %s344, 80
        %s346 = scalar_lea.vmem [#allocation2], %s345
        %p347 = pneg %p58
        %p348 = pneg %p55
        %s349 = sand.u32 %s23, 1
        %s350 = scalar_lea.sflag [#allocation5], %s349
        %s351 = sand.u32 %s75, 1
        %s352 = smul.addr %s351, 80
        %s353 = scalar_lea.vmem [#allocation4], %s352
        %p354 = pneg %p88
        %p355 = pneg %p85
        %s356 = sand.u32 %s23, 1
        %s357 = scalar_lea.sflag [#allocation5], %s356
        %s358 = sand.u32 %s105, 1
        %s359 = smul.addr %s358, 80
        %s360 = scalar_lea.vmem [#allocation6], %s359
        %p361 = pneg %p118
        %p362 = pneg %p115
        %p363 = pneg %p139
        %p364 = pneg %p136
        %p365 = pneg %p160
        %p366 = pneg %p157
        %p367 = pneg %p181
        %p368 = pneg %p178
        %p369 = pneg %p209
        %p370 = pneg %p206
        %p371 = scmp.lt.s32.totalorder %s27, 1
        %s372 = scalar_select %p371, %s27, 1
        %p373 = scmp.lt.s32.totalorder %s28, 7
        %s374 = scalar_select %p373, %s28, 7
        %s375 = smul.addr %s374, 8
        %s376 = smul.addr %s372, 64
        %s377 = sadd.s32 %s375, %s376
        %s378 = smul.addr %s377, 8
        %s379 = scalar_lea.vmem %s6, %s378
        %s380 = sadd.s32 %s28, 1
        %s381 = sadd.s32 %s28, 2
        %p382 = scmp.lt.s32.totalorder %s27, 1
        %s383 = scalar_select %p382, %s27, 1
        %p384 = scmp.lt.s32.totalorder %s28, 7
        %s385 = scalar_select %p384, %s28, 7
        %s386 = smul.addr %s385, 8
        %s387 = smul.addr %s383, 64
        %s388 = sadd.s32 %s386, %s387
        %s389 = smul.addr %s388, 8
        %s390 = scalar_lea.vmem %s6, %s389
        %v392 = vld [vmem:[%s319] sm:$0xff]
        %v393 = vld [vmem:[%s319 + $0x8] sm:$0xff]
        %v394 = vld [vmem:[%s319 + $0x10] sm:$0xff]
        %v395 = vld [vmem:[%s319 + $0x18] sm:$0xff]
        %v396 = vld [vmem:[%s319 + $0x20] sm:$0xff]
        %v397 = vld [vmem:[%s319 + $0x28] sm:$0xff]
        %v398 = vld [vmem:[%s319 + $0x30] sm:$0xff]
        %v399 = vld [vmem:[%s319 + $0x38] sm:$0xff]
        %v400 = vld [vmem:[%s3] sm:$0xf]
        %v401 = vld [vmem:[%s3 + $0x4] sm:$0xf]
        %v402 = vld [vmem:[%s3 + $0x8] sm:$0xf]
        %v403 = vld [vmem:[%s3 + $0xc] sm:$0xf]
        %v404 = vld [vmem:[%s3 + $0x10] sm:$0xf]
        %v405 = vld [vmem:[%s3 + $0x14] sm:$0xf]
        %v406 = vld [vmem:[%s3 + $0x18] sm:$0xf]
        %v407 = vld [vmem:[%s3 + $0x1c] sm:$0xf]
        %v408 = vld [vmem:[%s3 + $0x20] sm:$0xf]
        %v409 = vld [vmem:[%s3 + $0x24] sm:$0xf]
        %v410 = vld [vmem:[%s3 + $0x28] sm:$0xf]
        %v411 = vld [vmem:[%s3 + $0x2c] sm:$0xf]
        %v412 = vld [vmem:[%s3 + $0x30] sm:$0xf]
        %v413 = vld [vmem:[%s3 + $0x34] sm:$0xf]
        %v414 = vld [vmem:[%s3 + $0x38] sm:$0xf]
        %v415 = vld [vmem:[%s3 + $0x3c] sm:$0xf]
        %v416 = vld [vmem:[%s3 + $0x40] sm:$0xf]
        %v417 = vld [vmem:[%s3 + $0x44] sm:$0xf]
        %v418 = vld [vmem:[%s3 + $0x48] sm:$0xf]
        %v419 = vld [vmem:[%s3 + $0x4c] sm:$0xf]
        %v420 = vld [vmem:[%s3 + $0x50] sm:$0xf]
        %v421 = vld [vmem:[%s3 + $0x54] sm:$0xf]
        %v422 = vld [vmem:[%s3 + $0x58] sm:$0xf]
        %v423 = vld [vmem:[%s3 + $0x5c] sm:$0xf]
        %v424 = vld [vmem:[%s319 + $0x40] sm:$0xff]
        %s425 = scalar_lea.vmem %s3, 96
        %v426 = vld [vmem:[%s425] sm:$0xf]
        %v427 = vld [vmem:[%s425 + $0x4] sm:$0xf]
        %v428 = vld [vmem:[%s425 + $0x8] sm:$0xf]
        %v429 = vld [vmem:[%s425 + $0xc] sm:$0xf]
        %v430 = vld [vmem:[%s425 + $0x10] sm:$0xf]
        %v431 = vld [vmem:[%s425 + $0x14] sm:$0xf]
        %v432 = vld [vmem:[%s425 + $0x18] sm:$0xf]
        %v433 = vld [vmem:[%s425 + $0x1c] sm:$0xf]
        %v434 = vld [vmem:[%s425 + $0x20] sm:$0xf]
        %v435 = vld [vmem:[%s425 + $0x24] sm:$0xf]
        %v436 = vld [vmem:[%s425 + $0x28] sm:$0xf]
        %v437 = vld [vmem:[%s425 + $0x2c] sm:$0xf]
        %v438 = vld [vmem:[%s425 + $0x30] sm:$0xf]
        %v439 = vld [vmem:[%s425 + $0x34] sm:$0xf]
        %v440 = vld [vmem:[%s425 + $0x38] sm:$0xf]
        %v441 = vld [vmem:[%s425 + $0x3c] sm:$0xf]
        %v442 = vld [vmem:[%s425 + $0x40] sm:$0xf]
        %v443 = vld [vmem:[%s425 + $0x44] sm:$0xf]
        %v444 = vld [vmem:[%s425 + $0x48] sm:$0xf]
        %v445 = vld [vmem:[%s425 + $0x4c] sm:$0xf]
        %v446 = vld [vmem:[%s425 + $0x50] sm:$0xf]
        %v447 = vld [vmem:[%s425 + $0x54] sm:$0xf]
        %v448 = vld [vmem:[%s425 + $0x58] sm:$0xf]
        %v449 = vld [vmem:[%s425 + $0x5c] sm:$0xf]
        %v458 = vunpack.c.l.b16 %v393
        %v459 = vunpack.c.h.b16 %v393
        %v460 = vunpack.c.l.b16 %v394
        %v461 = vunpack.c.h.b16 %v394
        %v462 = vunpack.c.l.b16 %v395
        %v463 = vunpack.c.h.b16 %v395
        %v464 = vunpack.c.l.b16 %v396
        %v465 = vunpack.c.h.b16 %v396
        %v466 = vunpack.c.l.b16 %v397
        %v467 = vunpack.c.h.b16 %v397
        %v468 = vunpack.c.l.b16 %v398
        %v469 = vunpack.c.h.b16 %v398
        %v470 = vunpack.c.l.b16 %v399
        %v471 = vunpack.c.h.b16 %v399
        %v472 = vunpack.c.l.b16 %v424
        %v473 = vunpack.c.h.b16 %v424
        %v474 = vpack.c.b16 %v460, %v458
        %v475 = vpack.c.b16 %v461, %v459
        %v476 = vpack.c.b16 %v464, %v462
        %v477 = vpack.c.b16 %v465, %v463
        %v478 = vpack.c.b16 %v468, %v466
        %v479 = vpack.c.b16 %v469, %v467
        %v480 = vpack.c.b16 %v472, %v470
        %v481 = vpack.c.b16 %v473, %v471
        %v510 = vunpack.c.l.b16 %v426
        %v511 = vunpack.c.l.b16 %v427
        %v512 = vunpack.c.l.b16 %v428
        %v513 = vunpack.c.l.b16 %v429
        %v514 = vunpack.c.l.b16 %v430
        %v515 = vunpack.c.l.b16 %v431
        %v516 = vunpack.c.l.b16 %v432
        %v517 = vunpack.c.l.b16 %v433
        %v518 = vunpack.c.l.b16 %v434
        %v519 = vunpack.c.l.b16 %v435
        %v520 = vunpack.c.l.b16 %v436
        %v521 = vunpack.c.l.b16 %v437
        %v522 = vunpack.c.l.b16 %v438
        %v523 = vunpack.c.l.b16 %v439
        %v524 = vunpack.c.l.b16 %v440
        %v525 = vunpack.c.l.b16 %v441
        %v526 = vunpack.c.l.b16 %v442
        %v527 = vunpack.c.l.b16 %v443
        %v528 = vunpack.c.l.b16 %v444
        %v529 = vunpack.c.l.b16 %v445
        %v530 = vunpack.c.l.b16 %v446
        %v531 = vunpack.c.l.b16 %v447
        %v532 = vunpack.c.l.b16 %v448
        %v533 = vunpack.c.l.b16 %v449
        %v534 = vpack.c.b16 %v511, %v510
        %v535 = vpack.c.b16 %v513, %v512
        %v536 = vpack.c.b16 %v515, %v514
        %v537 = vpack.c.b16 %v517, %v516
        %v538 = vpack.c.b16 %v519, %v518
        %v539 = vpack.c.b16 %v521, %v520
        %v540 = vpack.c.b16 %v523, %v522
        %v541 = vpack.c.b16 %v525, %v524
        %v542 = vpack.c.b16 %v527, %v526
        %v543 = vpack.c.b16 %v529, %v528
        %v544 = vpack.c.b16 %v531, %v530
        %v545 = vpack.c.b16 %v533, %v532
        %vm558 = vcmask 523264
        %v560 = vsel %vm558, %v475, 0
        %v563 = vsel %vm558, %v477, 0
        %v566 = vsel %vm558, %v479, 0
        %v569 = vsel %vm558, %v481, 0
        %571 = vmatprep.subr.bf16.mxu0 0
        %572 = vmatpush1.bf16.msra.mxu0 %v534
        %573 = vmatprep.subr.bf16.mxu0 0
        %574 = vmatpush1.bf16.msra.mxu0 %v535
        %575 = vmatprep.subr.bf16.mxu0 0
        %576 = vmatpush1.bf16.msra.mxu0 %v536
        %577 = vmatprep.subr.bf16.mxu0 0
        %578 = vmatpush1.bf16.msra.mxu0 %v537
        %579 = vmatprep.subr.bf16.mxu0 0
        %580 = vmatpush1.bf16.msra.mxu0 %v538
        %581 = vmatprep.subr.bf16.mxu0 0
        %582 = vmatpush1.bf16.msra.mxu0 %v539
        %583 = vmatprep.subr.bf16.mxu0 0
        %584 = vmatpush1.bf16.msra.mxu0 %v540
        %585 = vmatprep.subr.bf16.mxu0 0
        %586 = vmatpush1.bf16.msra.mxu0 %v541
        %587 = vmatprep.subr.bf16.mxu0 0
        %588 = vmatpush1.bf16.msra.mxu0 %v542
        %589 = vmatprep.subr.bf16.mxu0 0
        %590 = vmatpush1.bf16.msra.mxu0 %v543
        %591 = vmatprep.subr.bf16.mxu0 0
        %592 = vmatpush1.bf16.msra.mxu0 %v544
        %593 = vmatprep.subr.bf16.mxu0 0
        %594 = vmatpush1.bf16.msra.mxu0 %v545
        %595 = vmatprep.subr.bf16.mxu0 0
        %596 = vmatpush1.bf16.msra.mxu0 0
        %597 = vmatprep.subr.bf16.mxu0 0
        %598 = vmatpush1.bf16.msra.mxu0 0
        %599 = vmatprep.subr.bf16.mxu0 0
        %600 = vmatpush1.bf16.msra.mxu0 0
        %601 = vmatprep.subr.bf16.mxu0 0
        %602 = vmatpush1.bf16.msra.mxu0 0
        %603 = vmatprep.mubr.bf16.mxu0 %v560
        %604 = vmatmul.mubr.bf16.gmra.mrb[0].mxu0 %v474
        %v605 = vpop.f32.mrb[0].mxu0
        %v606 = vadd.f32 0.0, %v605
        %v607 = vpop.f32.mrb[0].mxu0
        %v608 = vpop.f32.mrb[0].mxu0
        %v609 = vadd.f32 0.0, %v608
        %v610 = vpop.f32.mrb[0].mxu0
        %611 = vmatprep.mubr.bf16.mxu0 %v563
        %612 = vmatmul.mubr.bf16.gmra.mrb[0].mxu0 %v476
        %v613 = vpop.f32.mrb[0].mxu0
        %v614 = vadd.f32 0.0, %v613
        %v615 = vpop.f32.mrb[0].mxu0
        %v616 = vpop.f32.mrb[0].mxu0
        %v617 = vadd.f32 0.0, %v616
        %v618 = vpop.f32.mrb[0].mxu0
        %619 = vmatprep.mubr.bf16.mxu0 %v566
        %620 = vmatmul.mubr.bf16.gmra.mrb[0].mxu0 %v478
        %v621 = vpop.f32.mrb[0].mxu0
        %v622 = vadd.f32 0.0, %v621
        %v623 = vpop.f32.mrb[0].mxu0
        %v624 = vpop.f32.mrb[0].mxu0
        %v625 = vadd.f32 0.0, %v624
        %v626 = vpop.f32.mrb[0].mxu0
        %627 = vmatprep.mubr.bf16.mxu0 %v569
        %628 = vmatmul.mubr.bf16.gmra.mrb[0].mxu0 %v480
        %v629 = vpop.f32.mrb[0].mxu0
        %v630 = vadd.f32 0.0, %v629
        %v631 = vpop.f32.mrb[0].mxu0
        %v632 = vpop.f32.mrb[0].mxu0
        %v633 = vadd.f32 0.0, %v632
        %v634 = vpop.f32.mrb[0].mxu0
        %635 = vdwg.mxu0
        %v637 = vunpack.c.l.b16 %v392
        %v638 = vunpack.c.h.b16 %v392
        %v639 = vpack.c.b16 %v458, %v637
        %v640 = vpack.c.b16 %v459, %v638
        %v641 = vpack.c.b16 %v462, %v460
        %v642 = vpack.c.b16 %v463, %v461
        %v643 = vpack.c.b16 %v466, %v464
        %v644 = vpack.c.b16 %v467, %v465
        %v645 = vpack.c.b16 %v470, %v468
        %v646 = vpack.c.b16 %v471, %v469
        %v675 = vunpack.c.l.b16 %v400
        %v676 = vunpack.c.l.b16 %v401
        %v677 = vunpack.c.l.b16 %v402
        %v678 = vunpack.c.l.b16 %v403
        %v679 = vunpack.c.l.b16 %v404
        %v680 = vunpack.c.l.b16 %v405
        %v681 = vunpack.c.l.b16 %v406
        %v682 = vunpack.c.l.b16 %v407
        %v683 = vunpack.c.l.b16 %v408
        %v684 = vunpack.c.l.b16 %v409
        %v685 = vunpack.c.l.b16 %v410
        %v686 = vunpack.c.l.b16 %v411
        %v687 = vunpack.c.l.b16 %v412
        %v688 = vunpack.c.l.b16 %v413
        %v689 = vunpack.c.l.b16 %v414
        %v690 = vunpack.c.l.b16 %v415
        %v691 = vunpack.c.l.b16 %v416
        %v692 = vunpack.c.l.b16 %v417
        %v693 = vunpack.c.l.b16 %v418
        %v694 = vunpack.c.l.b16 %v419
        %v695 = vunpack.c.l.b16 %v420
        %v696 = vunpack.c.l.b16 %v421
        %v697 = vunpack.c.l.b16 %v422
        %v698 = vunpack.c.l.b16 %v423
        %v699 = vpack.c.b16 %v676, %v675
        %v700 = vpack.c.b16 %v678, %v677
        %v701 = vpack.c.b16 %v680, %v679
        %v702 = vpack.c.b16 %v682, %v681
        %v703 = vpack.c.b16 %v684, %v683
        %v704 = vpack.c.b16 %v686, %v685
        %v705 = vpack.c.b16 %v688, %v687
        %v706 = vpack.c.b16 %v690, %v689
        %v707 = vpack.c.b16 %v692, %v691
        %v708 = vpack.c.b16 %v694, %v693
        %v709 = vpack.c.b16 %v696, %v695
        %v710 = vpack.c.b16 %v698, %v697
        %v724 = vsel %vm558, %v640, 0
        %v727 = vsel %vm558, %v642, 0
        %v730 = vsel %vm558, %v644, 0
        %v733 = vsel %vm558, %v646, 0
        %735 = vmatprep.subr.bf16.mxu0 0
        %736 = vmatpush1.bf16.msra.mxu0 %v699
        %737 = vmatprep.subr.bf16.mxu0 0
        %738 = vmatpush1.bf16.msra.mxu0 %v700
        %739 = vmatprep.subr.bf16.mxu0 0
        %740 = vmatpush1.bf16.msra.mxu0 %v701
        %741 = vmatprep.subr.bf16.mxu0 0
        %742 = vmatpush1.bf16.msra.mxu0 %v702
        %743 = vmatprep.subr.bf16.mxu0 0
        %744 = vmatpush1.bf16.msra.mxu0 %v703
        %745 = vmatprep.subr.bf16.mxu0 0
        %746 = vmatpush1.bf16.msra.mxu0 %v704
        %747 = vmatprep.subr.bf16.mxu0 0
        %748 = vmatpush1.bf16.msra.mxu0 %v705
        %749 = vmatprep.subr.bf16.mxu0 0
        %750 = vmatpush1.bf16.msra.mxu0 %v706
        %751 = vmatprep.subr.bf16.mxu0 0
        %752 = vmatpush1.bf16.msra.mxu0 %v707
        %753 = vmatprep.subr.bf16.mxu0 0
        %754 = vmatpush1.bf16.msra.mxu0 %v708
        %755 = vmatprep.subr.bf16.mxu0 0
        %756 = vmatpush1.bf16.msra.mxu0 %v709
        %757 = vmatprep.subr.bf16.mxu0 0
        %758 = vmatpush1.bf16.msra.mxu0 %v710
        %759 = vmatprep.subr.bf16.mxu0 0
        %760 = vmatpush1.bf16.msra.mxu0 0
        %761 = vmatprep.subr.bf16.mxu0 0
        %762 = vmatpush1.bf16.msra.mxu0 0
        %763 = vmatprep.subr.bf16.mxu0 0
        %764 = vmatpush1.bf16.msra.mxu0 0
        %765 = vmatprep.subr.bf16.mxu0 0
        %766 = vmatpush1.bf16.msra.mxu0 0
        %767 = vmatprep.mubr.bf16.mxu0 %v724
        %768 = vmatmul.mubr.bf16.gmra.mrb[0].mxu0 %v639
        %v769 = vpop.f32.mrb[0].mxu0
        %v770 = vadd.f32 %v606, %v769
        %v771 = vpop.f32.mrb[0].mxu0
        %v772 = vpop.f32.mrb[0].mxu0
        %v773 = vadd.f32 %v609, %v772
        %v774 = vpop.f32.mrb[0].mxu0
        %775 = vmatprep.mubr.bf16.mxu0 %v727
        %776 = vmatmul.mubr.bf16.gmra.mrb[0].mxu0 %v641
        %v777 = vpop.f32.mrb[0].mxu0
        %v778 = vadd.f32 %v614, %v777
        %v779 = vpop.f32.mrb[0].mxu0
        %v780 = vpop.f32.mrb[0].mxu0
        %v781 = vadd.f32 %v617, %v780
        %v782 = vpop.f32.mrb[0].mxu0
        %783 = vmatprep.mubr.bf16.mxu0 %v730
        %784 = vmatmul.mubr.bf16.gmra.mrb[0].mxu0 %v643
        %v785 = vpop.f32.mrb[0].mxu0
        %v786 = vadd.f32 %v622, %v785
        %v787 = vpop.f32.mrb[0].mxu0
        %v788 = vpop.f32.mrb[0].mxu0
        %v789 = vadd.f32 %v625, %v788
        %v790 = vpop.f32.mrb[0].mxu0
        %791 = vmatprep.mubr.bf16.mxu0 %v733
        %792 = vmatmul.mubr.bf16.gmra.mrb[0].mxu0 %v645
        %v793 = vpop.f32.mrb[0].mxu0
        %v794 = vadd.f32 %v630, %v793
        %v795 = vpop.f32.mrb[0].mxu0
        %v796 = vpop.f32.mrb[0].mxu0
        %v797 = vadd.f32 %v633, %v796
        %v798 = vpop.f32.mrb[0].mxu0
        %799 = vdwg.mxu0
        %v800 = vld [vmem:[%s319 + $0x10] sm:$0xff]
        %v801 = vld [vmem:[%s319 + $0x18] sm:$0xff]
        %v802 = vld [vmem:[%s319 + $0x20] sm:$0xff]
        %v803 = vld [vmem:[%s319 + $0x28] sm:$0xff]
        %v804 = vld [vmem:[%s319 + $0x30] sm:$0xff]
        %v805 = vld [vmem:[%s319 + $0x38] sm:$0xff]
        %v806 = vld [vmem:[%s319 + $0x40] sm:$0xff]
        %v807 = vld [vmem:[%s319 + $0x48] sm:$0xff]
        %s808 = scalar_lea.vmem %s3, 192
        %v809 = vld [vmem:[%s808] sm:$0xf]
        %v810 = vld [vmem:[%s808 + $0x4] sm:$0xf]
        %v811 = vld [vmem:[%s808 + $0x8] sm:$0xf]
        %v812 = vld [vmem:[%s808 + $0xc] sm:$0xf]
        %v813 = vld [vmem:[%s808 + $0x10] sm:$0xf]
        %v814 = vld [vmem:[%s808 + $0x14] sm:$0xf]
        %v815 = vld [vmem:[%s808 + $0x18] sm:$0xf]
        %v816 = vld [vmem:[%s808 + $0x1c] sm:$0xf]
        %v817 = vld [vmem:[%s808 + $0x20] sm:$0xf]
        %v818 = vld [vmem:[%s808 + $0x24] sm:$0xf]
        %v819 = vld [vmem:[%s808 + $0x28] sm:$0xf]
        %v820 = vld [vmem:[%s808 + $0x2c] sm:$0xf]
        %v821 = vld [vmem:[%s808 + $0x30] sm:$0xf]
        %v822 = vld [vmem:[%s808 + $0x34] sm:$0xf]
        %v823 = vld [vmem:[%s808 + $0x38] sm:$0xf]
        %v824 = vld [vmem:[%s808 + $0x3c] sm:$0xf]
        %v825 = vld [vmem:[%s808 + $0x40] sm:$0xf]
        %v826 = vld [vmem:[%s808 + $0x44] sm:$0xf]
        %v827 = vld [vmem:[%s808 + $0x48] sm:$0xf]
        %v828 = vld [vmem:[%s808 + $0x4c] sm:$0xf]
        %v829 = vld [vmem:[%s808 + $0x50] sm:$0xf]
        %v830 = vld [vmem:[%s808 + $0x54] sm:$0xf]
        %v831 = vld [vmem:[%s808 + $0x58] sm:$0xf]
        %v832 = vld [vmem:[%s808 + $0x5c] sm:$0xf]
        %v841 = vunpack.c.l.b16 %v800
        %v842 = vunpack.c.h.b16 %v800
        %v843 = vunpack.c.l.b16 %v801
        %v844 = vunpack.c.h.b16 %v801
        %v845 = vunpack.c.l.b16 %v802
        %v846 = vunpack.c.h.b16 %v802
        %v847 = vunpack.c.l.b16 %v803
        %v848 = vunpack.c.h.b16 %v803
        %v849 = vunpack.c.l.b16 %v804
        %v850 = vunpack.c.h.b16 %v804
        %v851 = vunpack.c.l.b16 %v805
        %v852 = vunpack.c.h.b16 %v805
        %v853 = vunpack.c.l.b16 %v806
        %v854 = vunpack.c.h.b16 %v806
        %v855 = vunpack.c.l.b16 %v807
        %v856 = vunpack.c.h.b16 %v807
        %v857 = vpack.c.b16 %v843, %v841
        %v858 = vpack.c.b16 %v844, %v842
        %v859 = vpack.c.b16 %v847, %v845
        %v860 = vpack.c.b16 %v848, %v846
        %v861 = vpack.c.b16 %v851, %v849
        %v862 = vpack.c.b16 %v852, %v850
        %v863 = vpack.c.b16 %v855, %v853
        %v864 = vpack.c.b16 %v856, %v854
        %v893 = vunpack.c.l.b16 %v809
        %v894 = vunpack.c.l.b16 %v810
        %v895 = vunpack.c.l.b16 %v811
        %v896 = vunpack.c.l.b16 %v812
        %v897 = vunpack.c.l.b16 %v813
        %v898 = vunpack.c.l.b16 %v814
        %v899 = vunpack.c.l.b16 %v815
        %v900 = vunpack.c.l.b16 %v816
        %v901 = vunpack.c.l.b16 %v817
        %v902 = vunpack.c.l.b16 %v818
        %v903 = vunpack.c.l.b16 %v819
        %v904 = vunpack.c.l.b16 %v820
        %v905 = vunpack.c.l.b16 %v821
        %v906 = vunpack.c.l.b16 %v822
        %v907 = vunpack.c.l.b16 %v823
        %v908 = vunpack.c.l.b16 %v824
        %v909 = vunpack.c.l.b16 %v825
        %v910 = vunpack.c.l.b16 %v826
        %v911 = vunpack.c.l.b16 %v827
        %v912 = vunpack.c.l.b16 %v828
        %v913 = vunpack.c.l.b16 %v829
        %v914 = vunpack.c.l.b16 %v830
        %v915 = vunpack.c.l.b16 %v831
        %v916 = vunpack.c.l.b16 %v832
        %v917 = vpack.c.b16 %v894, %v893
        %v918 = vpack.c.b16 %v896, %v895
        %v919 = vpack.c.b16 %v898, %v897
        %v920 = vpack.c.b16 %v900, %v899
        %v921 = vpack.c.b16 %v902, %v901
        %v922 = vpack.c.b16 %v904, %v903
        %v923 = vpack.c.b16 %v906, %v905
        %v924 = vpack.c.b16 %v908, %v907
        %v925 = vpack.c.b16 %v910, %v909
        %v926 = vpack.c.b16 %v912, %v911
        %v927 = vpack.c.b16 %v914, %v913
        %v928 = vpack.c.b16 %v916, %v915
        %v942 = vsel %vm558, %v858, 0
        %v945 = vsel %vm558, %v860, 0
        %v948 = vsel %vm558, %v862, 0
        %v951 = vsel %vm558, %v864, 0
        %953 = vmatprep.subr.bf16.mxu0 0
        %954 = vmatpush1.bf16.msra.mxu0 %v917
        %955 = vmatprep.subr.bf16.mxu0 0
        %956 = vmatpush1.bf16.msra.mxu0 %v918
        %957 = vmatprep.subr.bf16.mxu0 0
        %958 = vmatpush1.bf16.msra.mxu0 %v919
        %959 = vmatprep.subr.bf16.mxu0 0
        %960 = vmatpush1.bf16.msra.mxu0 %v920
        %961 = vmatprep.subr.bf16.mxu0 0
        %962 = vmatpush1.bf16.msra.mxu0 %v921
        %963 = vmatprep.subr.bf16.mxu0 0
        %964 = vmatpush1.bf16.msra.mxu0 %v922
        %965 = vmatprep.subr.bf16.mxu0 0
        %966 = vmatpush1.bf16.msra.mxu0 %v923
        %967 = vmatprep.subr.bf16.mxu0 0
        %968 = vmatpush1.bf16.msra.mxu0 %v924
        %969 = vmatprep.subr.bf16.mxu0 0
        %970 = vmatpush1.bf16.msra.mxu0 %v925
        %971 = vmatprep.subr.bf16.mxu0 0
        %972 = vmatpush1.bf16.msra.mxu0 %v926
        %973 = vmatprep.subr.bf16.mxu0 0
        %974 = vmatpush1.bf16.msra.mxu0 %v927
        %975 = vmatprep.subr.bf16.mxu0 0
        %976 = vmatpush1.bf16.msra.mxu0 %v928
        %977 = vmatprep.subr.bf16.mxu0 0
        %978 = vmatpush1.bf16.msra.mxu0 0
        %979 = vmatprep.subr.bf16.mxu0 0
        %980 = vmatpush1.bf16.msra.mxu0 0
        %981 = vmatprep.subr.bf16.mxu0 0
        %982 = vmatpush1.bf16.msra.mxu0 0
        %983 = vmatprep.subr.bf16.mxu0 0
        %984 = vmatpush1.bf16.msra.mxu0 0
        %985 = vmatprep.mubr.bf16.mxu0 %v942
        %986 = vmatmul.mubr.bf16.gmra.mrb[0].mxu0 %v857
        %v987 = vpop.f32.mrb[0].mxu0
        %v988 = vadd.f32 0.0, %v987
        %v989 = vpop.f32.mrb[0].mxu0
        %v990 = vpop.f32.mrb[0].mxu0
        %v991 = vadd.f32 0.0, %v990
        %v992 = vpop.f32.mrb[0].mxu0
        %993 = vmatprep.mubr.bf16.mxu0 %v945
        %994 = vmatmul.mubr.bf16.gmra.mrb[0].mxu0 %v859
        %v995 = vpop.f32.mrb[0].mxu0
        %v996 = vadd.f32 0.0, %v995
        %v997 = vpop.f32.mrb[0].mxu0
        %v998 = vpop.f32.mrb[0].mxu0
        %v999 = vadd.f32 0.0, %v998
        %v1000 = vpop.f32.mrb[0].mxu0
        %1001 = vmatprep.mubr.bf16.mxu0 %v948
        %1002 = vmatmul.mubr.bf16.gmra.mrb[0].mxu0 %v861
        %v1003 = vpop.f32.mrb[0].mxu0
        %v1004 = vadd.f32 0.0, %v1003
        %v1005 = vpop.f32.mrb[0].mxu0
        %v1006 = vpop.f32.mrb[0].mxu0
        %v1007 = vadd.f32 0.0, %v1006
        %v1008 = vpop.f32.mrb[0].mxu0
        %1009 = vmatprep.mubr.bf16.mxu0 %v951
        %1010 = vmatmul.mubr.bf16.gmra.mrb[0].mxu0 %v863
        %v1011 = vpop.f32.mrb[0].mxu0
        %v1012 = vadd.f32 0.0, %v1011
        %v1013 = vpop.f32.mrb[0].mxu0
        %v1014 = vpop.f32.mrb[0].mxu0
        %v1015 = vadd.f32 0.0, %v1014
        %v1016 = vpop.f32.mrb[0].mxu0
        %1017 = vdwg.mxu0
        %v1018 = vadd.f32 %v770, %v988
        %v1019 = vadd.f32 %v773, %v991
        %v1020 = vadd.f32 %v778, %v996
        %v1021 = vadd.f32 %v781, %v999
        %v1022 = vadd.f32 %v786, %v1004
        %v1023 = vadd.f32 %v789, %v1007
        %v1024 = vadd.f32 %v794, %v1012
        %v1025 = vadd.f32 %v797, %v1015
        %v1026 = vld [vmem:[%s328] sm:$0xff]
        %v1027 = vld [vmem:[%s328 + $0x8] sm:$0xff]
        %v1028 = vld [vmem:[%s328 + $0x10] sm:$0xff]
        %v1029 = vld [vmem:[%s328 + $0x18] sm:$0xff]
        %v1030 = vld [vmem:[%s328 + $0x20] sm:$0xff]
        %v1031 = vld [vmem:[%s328 + $0x28] sm:$0xff]
        %v1032 = vld [vmem:[%s328 + $0x30] sm:$0xff]
        %v1033 = vld [vmem:[%s328 + $0x38] sm:$0xff]
        %s1034 = scalar_lea.vmem %s3, 288
        %v1035 = vld [vmem:[%s1034] sm:$0xf]
        %v1036 = vld [vmem:[%s1034 + $0x4] sm:$0xf]
        %v1037 = vld [vmem:[%s1034 + $0x8] sm:$0xf]
        %v1038 = vld [vmem:[%s1034 + $0xc] sm:$0xf]
        %v1039 = vld [vmem:[%s1034 + $0x10] sm:$0xf]
        %v1040 = vld [vmem:[%s1034 + $0x14] sm:$0xf]
        %v1041 = vld [vmem:[%s1034 + $0x18] sm:$0xf]
        %v1042 = vld [vmem:[%s1034 + $0x1c] sm:$0xf]
        %v1043 = vld [vmem:[%s1034 + $0x20] sm:$0xf]
        %v1044 = vld [vmem:[%s1034 + $0x24] sm:$0xf]
        %v1045 = vld [vmem:[%s1034 + $0x28] sm:$0xf]
        %v1046 = vld [vmem:[%s1034 + $0x2c] sm:$0xf]
        %v1047 = vld [vmem:[%s1034 + $0x30] sm:$0xf]
        %v1048 = vld [vmem:[%s1034 + $0x34] sm:$0xf]
        %v1049 = vld [vmem:[%s1034 + $0x38] sm:$0xf]
        %v1050 = vld [vmem:[%s1034 + $0x3c] sm:$0xf]
        %v1051 = vld [vmem:[%s1034 + $0x40] sm:$0xf]
        %v1052 = vld [vmem:[%s1034 + $0x44] sm:$0xf]
        %v1053 = vld [vmem:[%s1034 + $0x48] sm:$0xf]
        %v1054 = vld [vmem:[%s1034 + $0x4c] sm:$0xf]
        %v1055 = vld [vmem:[%s1034 + $0x50] sm:$0xf]
        %v1056 = vld [vmem:[%s1034 + $0x54] sm:$0xf]
        %v1057 = vld [vmem:[%s1034 + $0x58] sm:$0xf]
        %v1058 = vld [vmem:[%s1034 + $0x5c] sm:$0xf]
        %v1067 = vunpack.c.l.b16 %v1026
        %v1068 = vunpack.c.h.b16 %v1026
        %v1069 = vunpack.c.l.b16 %v1027
        %v1070 = vunpack.c.h.b16 %v1027
        %v1071 = vunpack.c.l.b16 %v1028
        %v1072 = vunpack.c.h.b16 %v1028
        %v1073 = vunpack.c.l.b16 %v1029
        %v1074 = vunpack.c.h.b16 %v1029
        %v1075 = vunpack.c.l.b16 %v1030
        %v1076 = vunpack.c.h.b16 %v1030
        %v1077 = vunpack.c.l.b16 %v1031
        %v1078 = vunpack.c.h.b16 %v1031
        %v1079 = vunpack.c.l.b16 %v1032
        %v1080 = vunpack.c.h.b16 %v1032
        %v1081 = vunpack.c.l.b16 %v1033
        %v1082 = vunpack.c.h.b16 %v1033
        %v1083 = vpack.c.b16 %v1069, %v1067
        %v1084 = vpack.c.b16 %v1070, %v1068
        %v1085 = vpack.c.b16 %v1073, %v1071
        %v1086 = vpack.c.b16 %v1074, %v1072
        %v1087 = vpack.c.b16 %v1077, %v1075
        %v1088 = vpack.c.b16 %v1078, %v1076
        %v1089 = vpack.c.b16 %v1081, %v1079
        %v1090 = vpack.c.b16 %v1082, %v1080
        %v1119 = vunpack.c.l.b16 %v1035
        %v1120 = vunpack.c.l.b16 %v1036
        %v1121 = vunpack.c.l.b16 %v1037
        %v1122 = vunpack.c.l.b16 %v1038
        %v1123 = vunpack.c.l.b16 %v1039
        %v1124 = vunpack.c.l.b16 %v1040
        %v1125 = vunpack.c.l.b16 %v1041
        %v1126 = vunpack.c.l.b16 %v1042
        %v1127 = vunpack.c.l.b16 %v1043
        %v1128 = vunpack.c.l.b16 %v1044
        %v1129 = vunpack.c.l.b16 %v1045
        %v1130 = vunpack.c.l.b16 %v1046
        %v1131 = vunpack.c.l.b16 %v1047
        %v1132 = vunpack.c.l.b16 %v1048
        %v1133 = vunpack.c.l.b16 %v1049
        %v1134 = vunpack.c.l.b16 %v1050
        %v1135 = vunpack.c.l.b16 %v1051
        %v1136 = vunpack.c.l.b16 %v1052
        %v1137 = vunpack.c.l.b16 %v1053
        %v1138 = vunpack.c.l.b16 %v1054
        %v1139 = vunpack.c.l.b16 %v1055
        %v1140 = vunpack.c.l.b16 %v1056
        %v1141 = vunpack.c.l.b16 %v1057
        %v1142 = vunpack.c.l.b16 %v1058
        %v1143 = vpack.c.b16 %v1120, %v1119
        %v1144 = vpack.c.b16 %v1122, %v1121
        %v1145 = vpack.c.b16 %v1124, %v1123
        %v1146 = vpack.c.b16 %v1126, %v1125
        %v1147 = vpack.c.b16 %v1128, %v1127
        %v1148 = vpack.c.b16 %v1130, %v1129
        %v1149 = vpack.c.b16 %v1132, %v1131
        %v1150 = vpack.c.b16 %v1134, %v1133
        %v1151 = vpack.c.b16 %v1136, %v1135
        %v1152 = vpack.c.b16 %v1138, %v1137
        %v1153 = vpack.c.b16 %v1140, %v1139
        %v1154 = vpack.c.b16 %v1142, %v1141
        %v1168 = vsel %vm558, %v1084, 0
        %v1171 = vsel %vm558, %v1086, 0
        %v1174 = vsel %vm558, %v1088, 0
        %v1177 = vsel %vm558, %v1090, 0
        %1179 = vmatprep.subr.bf16.mxu0 0
        %1180 = vmatpush1.bf16.msra.mxu0 %v1143
        %1181 = vmatprep.subr.bf16.mxu0 0
        %1182 = vmatpush1.bf16.msra.mxu0 %v1144
        %1183 = vmatprep.subr.bf16.mxu0 0
        %1184 = vmatpush1.bf16.msra.mxu0 %v1145
        %1185 = vmatprep.subr.bf16.mxu0 0
        %1186 = vmatpush1.bf16.msra.mxu0 %v1146
        %1187 = vmatprep.subr.bf16.mxu0 0
        %1188 = vmatpush1.bf16.msra.mxu0 %v1147
        %1189 = vmatprep.subr.bf16.mxu0 0
        %1190 = vmatpush1.bf16.msra.mxu0 %v1148
        %1191 = vmatprep.subr.bf16.mxu0 0
        %1192 = vmatpush1.bf16.msra.mxu0 %v1149
        %1193 = vmatprep.subr.bf16.mxu0 0
        %1194 = vmatpush1.bf16.msra.mxu0 %v1150
        %1195 = vmatprep.subr.bf16.mxu0 0
        %1196 = vmatpush1.bf16.msra.mxu0 %v1151
        %1197 = vmatprep.subr.bf16.mxu0 0
        %1198 = vmatpush1.bf16.msra.mxu0 %v1152
        %1199 = vmatprep.subr.bf16.mxu0 0
        %1200 = vmatpush1.bf16.msra.mxu0 %v1153
        %1201 = vmatprep.subr.bf16.mxu0 0
        %1202 = vmatpush1.bf16.msra.mxu0 %v1154
        %1203 = vmatprep.subr.bf16.mxu0 0
        %1204 = vmatpush1.bf16.msra.mxu0 0
        %1205 = vmatprep.subr.bf16.mxu0 0
        %1206 = vmatpush1.bf16.msra.mxu0 0
        %1207 = vmatprep.subr.bf16.mxu0 0
        %1208 = vmatpush1.bf16.msra.mxu0 0
        %1209 = vmatprep.subr.bf16.mxu0 0
        %1210 = vmatpush1.bf16.msra.mxu0 0
        %1211 = vmatprep.mubr.bf16.mxu0 %v1168
        %1212 = vmatmul.mubr.bf16.gmra.mrb[0].mxu0 %v1083
        %v1213 = vpop.f32.mrb[0].mxu0
        %v1214 = vadd.f32 0.0, %v1213
        %v1215 = vpop.f32.mrb[0].mxu0
        %v1216 = vpop.f32.mrb[0].mxu0
        %v1217 = vadd.f32 0.0, %v1216
        %v1218 = vpop.f32.mrb[0].mxu0
        %1219 = vmatprep.mubr.bf16.mxu0 %v1171
        %1220 = vmatmul.mubr.bf16.gmra.mrb[0].mxu0 %v1085
        %v1221 = vpop.f32.mrb[0].mxu0
        %v1222 = vadd.f32 0.0, %v1221
        %v1223 = vpop.f32.mrb[0].mxu0
        %v1224 = vpop.f32.mrb[0].mxu0
        %v1225 = vadd.f32 0.0, %v1224
        %v1226 = vpop.f32.mrb[0].mxu0
        %1227 = vmatprep.mubr.bf16.mxu0 %v1174
        %1228 = vmatmul.mubr.bf16.gmra.mrb[0].mxu0 %v1087
        %v1229 = vpop.f32.mrb[0].mxu0
        %v1230 = vadd.f32 0.0, %v1229
        %v1231 = vpop.f32.mrb[0].mxu0
        %v1232 = vpop.f32.mrb[0].mxu0
        %v1233 = vadd.f32 0.0, %v1232
        %v1234 = vpop.f32.mrb[0].mxu0
        %1235 = vmatprep.mubr.bf16.mxu0 %v1177
        %1236 = vmatmul.mubr.bf16.gmra.mrb[0].mxu0 %v1089
        %v1237 = vpop.f32.mrb[0].mxu0
        %v1238 = vadd.f32 0.0, %v1237
        %v1239 = vpop.f32.mrb[0].mxu0
        %v1240 = vpop.f32.mrb[0].mxu0
        %v1241 = vadd.f32 0.0, %v1240
        %v1242 = vpop.f32.mrb[0].mxu0
        %1243 = vdwg.mxu0
        %v1244 = vadd.f32 %v1018, %v1214
        %v1245 = vadd.f32 %v1019, %v1217
        %v1246 = vadd.f32 %v1020, %v1222
        %v1247 = vadd.f32 %v1021, %v1225
        %v1248 = vadd.f32 %v1022, %v1230
        %v1249 = vadd.f32 %v1023, %v1233
        %v1250 = vadd.f32 %v1024, %v1238
        %v1251 = vadd.f32 %v1025, %v1241
        %v1252 = vld [vmem:[%s328 + $0x8] sm:$0xff]
        %v1253 = vld [vmem:[%s328 + $0x10] sm:$0xff]
        %v1254 = vld [vmem:[%s328 + $0x18] sm:$0xff]
        %v1255 = vld [vmem:[%s328 + $0x20] sm:$0xff]
        %v1256 = vld [vmem:[%s328 + $0x28] sm:$0xff]
        %v1257 = vld [vmem:[%s328 + $0x30] sm:$0xff]
        %v1258 = vld [vmem:[%s328 + $0x38] sm:$0xff]
        %v1259 = vld [vmem:[%s328 + $0x40] sm:$0xff]
        %s1260 = scalar_lea.vmem %s3, 384
        %v1261 = vld [vmem:[%s1260] sm:$0xf]
        %v1262 = vld [vmem:[%s1260 + $0x4] sm:$0xf]
        %v1263 = vld [vmem:[%s1260 + $0x8] sm:$0xf]
        %v1264 = vld [vmem:[%s1260 + $0xc] sm:$0xf]
        %v1265 = vld [vmem:[%s1260 + $0x10] sm:$0xf]
        %v1266 = vld [vmem:[%s1260 + $0x14] sm:$0xf]
        %v1267 = vld [vmem:[%s1260 + $0x18] sm:$0xf]
        %v1268 = vld [vmem:[%s1260 + $0x1c] sm:$0xf]
        %v1269 = vld [vmem:[%s1260 + $0x20] sm:$0xf]
        %v1270 = vld [vmem:[%s1260 + $0x24] sm:$0xf]
        %v1271 = vld [vmem:[%s1260 + $0x28] sm:$0xf]
        %v1272 = vld [vmem:[%s1260 + $0x2c] sm:$0xf]
        %v1273 = vld [vmem:[%s1260 + $0x30] sm:$0xf]
        %v1274 = vld [vmem:[%s1260 + $0x34] sm:$0xf]
        %v1275 = vld [vmem:[%s1260 + $0x38] sm:$0xf]
        %v1276 = vld [vmem:[%s1260 + $0x3c] sm:$0xf]
        %v1277 = vld [vmem:[%s1260 + $0x40] sm:$0xf]
        %v1278 = vld [vmem:[%s1260 + $0x44] sm:$0xf]
        %v1279 = vld [vmem:[%s1260 + $0x48] sm:$0xf]
        %v1280 = vld [vmem:[%s1260 + $0x4c] sm:$0xf]
        %v1281 = vld [vmem:[%s1260 + $0x50] sm:$0xf]
        %v1282 = vld [vmem:[%s1260 + $0x54] sm:$0xf]
        %v1283 = vld [vmem:[%s1260 + $0x58] sm:$0xf]
        %v1284 = vld [vmem:[%s1260 + $0x5c] sm:$0xf]
        %v1293 = vunpack.c.l.b16 %v1252
        %v1294 = vunpack.c.h.b16 %v1252
        %v1295 = vunpack.c.l.b16 %v1253
        %v1296 = vunpack.c.h.b16 %v1253
        %v1297 = vunpack.c.l.b16 %v1254
        %v1298 = vunpack.c.h.b16 %v1254
        %v1299 = vunpack.c.l.b16 %v1255
        %v1300 = vunpack.c.h.b16 %v1255
        %v1301 = vunpack.c.l.b16 %v1256
        %v1302 = vunpack.c.h.b16 %v1256
        %v1303 = vunpack.c.l.b16 %v1257
        %v1304 = vunpack.c.h.b16 %v1257
        %v1305 = vunpack.c.l.b16 %v1258
        %v1306 = vunpack.c.h.b16 %v1258
        %v1307 = vunpack.c.l.b16 %v1259
        %v1308 = vunpack.c.h.b16 %v1259
        %v1309 = vpack.c.b16 %v1295, %v1293
        %v1310 = vpack.c.b16 %v1296, %v1294
        %v1311 = vpack.c.b16 %v1299, %v1297
        %v1312 = vpack.c.b16 %v1300, %v1298
        %v1313 = vpack.c.b16 %v1303, %v1301
        %v1314 = vpack.c.b16 %v1304, %v1302
        %v1315 = vpack.c.b16 %v1307, %v1305
        %v1316 = vpack.c.b16 %v1308, %v1306
        %v1345 = vunpack.c.l.b16 %v1261
        %v1346 = vunpack.c.l.b16 %v1262
        %v1347 = vunpack.c.l.b16 %v1263
        %v1348 = vunpack.c.l.b16 %v1264
        %v1349 = vunpack.c.l.b16 %v1265
        %v1350 = vunpack.c.l.b16 %v1266
        %v1351 = vunpack.c.l.b16 %v1267
        %v1352 = vunpack.c.l.b16 %v1268
        %v1353 = vunpack.c.l.b16 %v1269
        %v1354 = vunpack.c.l.b16 %v1270
        %v1355 = vunpack.c.l.b16 %v1271
        %v1356 = vunpack.c.l.b16 %v1272
        %v1357 = vunpack.c.l.b16 %v1273
        %v1358 = vunpack.c.l.b16 %v1274
        %v1359 = vunpack.c.l.b16 %v1275
        %v1360 = vunpack.c.l.b16 %v1276
        %v1361 = vunpack.c.l.b16 %v1277
        %v1362 = vunpack.c.l.b16 %v1278
        %v1363 = vunpack.c.l.b16 %v1279
        %v1364 = vunpack.c.l.b16 %v1280
        %v1365 = vunpack.c.l.b16 %v1281
        %v1366 = vunpack.c.l.b16 %v1282
        %v1367 = vunpack.c.l.b16 %v1283
        %v1368 = vunpack.c.l.b16 %v1284
        %v1369 = vpack.c.b16 %v1346, %v1345
        %v1370 = vpack.c.b16 %v1348, %v1347
        %v1371 = vpack.c.b16 %v1350, %v1349
        %v1372 = vpack.c.b16 %v1352, %v1351
        %v1373 = vpack.c.b16 %v1354, %v1353
        %v1374 = vpack.c.b16 %v1356, %v1355
        %v1375 = vpack.c.b16 %v1358, %v1357
        %v1376 = vpack.c.b16 %v1360, %v1359
        %v1377 = vpack.c.b16 %v1362, %v1361
        %v1378 = vpack.c.b16 %v1364, %v1363
        %v1379 = vpack.c.b16 %v1366, %v1365
        %v1380 = vpack.c.b16 %v1368, %v1367
        %v1394 = vsel %vm558, %v1310, 0
        %v1397 = vsel %vm558, %v1312, 0
        %v1400 = vsel %vm558, %v1314, 0
        %v1403 = vsel %vm558, %v1316, 0
        %1405 = vmatprep.subr.bf16.mxu0 0
        %1406 = vmatpush1.bf16.msra.mxu0 %v1369
        %1407 = vmatprep.subr.bf16.mxu0 0
        %1408 = vmatpush1.bf16.msra.mxu0 %v1370
        %1409 = vmatprep.subr.bf16.mxu0 0
        %1410 = vmatpush1.bf16.msra.mxu0 %v1371
        %1411 = vmatprep.subr.bf16.mxu0 0
        %1412 = vmatpush1.bf16.msra.mxu0 %v1372
        %1413 = vmatprep.subr.bf16.mxu0 0
        %1414 = vmatpush1.bf16.msra.mxu0 %v1373
        %1415 = vmatprep.subr.bf16.mxu0 0
        %1416 = vmatpush1.bf16.msra.mxu0 %v1374
        %1417 = vmatprep.subr.bf16.mxu0 0
        %1418 = vmatpush1.bf16.msra.mxu0 %v1375
        %1419 = vmatprep.subr.bf16.mxu0 0
        %1420 = vmatpush1.bf16.msra.mxu0 %v1376
        %1421 = vmatprep.subr.bf16.mxu0 0
        %1422 = vmatpush1.bf16.msra.mxu0 %v1377
        %1423 = vmatprep.subr.bf16.mxu0 0
        %1424 = vmatpush1.bf16.msra.mxu0 %v1378
        %1425 = vmatprep.subr.bf16.mxu0 0
        %1426 = vmatpush1.bf16.msra.mxu0 %v1379
        %1427 = vmatprep.subr.bf16.mxu0 0
        %1428 = vmatpush1.bf16.msra.mxu0 %v1380
        %1429 = vmatprep.subr.bf16.mxu0 0
        %1430 = vmatpush1.bf16.msra.mxu0 0
        %1431 = vmatprep.subr.bf16.mxu0 0
        %1432 = vmatpush1.bf16.msra.mxu0 0
        %1433 = vmatprep.subr.bf16.mxu0 0
        %1434 = vmatpush1.bf16.msra.mxu0 0
        %1435 = vmatprep.subr.bf16.mxu0 0
        %1436 = vmatpush1.bf16.msra.mxu0 0
        %1437 = vmatprep.mubr.bf16.mxu0 %v1394
        %1438 = vmatmul.mubr.bf16.gmra.mrb[0].mxu0 %v1309
        %v1439 = vpop.f32.mrb[0].mxu0
        %v1440 = vadd.f32 0.0, %v1439
        %v1441 = vpop.f32.mrb[0].mxu0
        %v1442 = vpop.f32.mrb[0].mxu0
        %v1443 = vadd.f32 0.0, %v1442
        %v1444 = vpop.f32.mrb[0].mxu0
        %1445 = vmatprep.mubr.bf16.mxu0 %v1397
        %1446 = vmatmul.mubr.bf16.gmra.mrb[0].mxu0 %v1311
        %v1447 = vpop.f32.mrb[0].mxu0
        %v1448 = vadd.f32 0.0, %v1447
        %v1449 = vpop.f32.mrb[0].mxu0
        %v1450 = vpop.f32.mrb[0].mxu0
        %v1451 = vadd.f32 0.0, %v1450
        %v1452 = vpop.f32.mrb[0].mxu0
        %1453 = vmatprep.mubr.bf16.mxu0 %v1400
        %1454 = vmatmul.mubr.bf16.gmra.mrb[0].mxu0 %v1313
        %v1455 = vpop.f32.mrb[0].mxu0
        %v1456 = vadd.f32 0.0, %v1455
        %v1457 = vpop.f32.mrb[0].mxu0
        %v1458 = vpop.f32.mrb[0].mxu0
        %v1459 = vadd.f32 0.0, %v1458
        %v1460 = vpop.f32.mrb[0].mxu0
        %1461 = vmatprep.mubr.bf16.mxu0 %v1403
        %1462 = vmatmul.mubr.bf16.gmra.mrb[0].mxu0 %v1315
        %v1463 = vpop.f32.mrb[0].mxu0
        %v1464 = vadd.f32 0.0, %v1463
        %v1465 = vpop.f32.mrb[0].mxu0
        %v1466 = vpop.f32.mrb[0].mxu0
        %v1467 = vadd.f32 0.0, %v1466
        %v1468 = vpop.f32.mrb[0].mxu0
        %1469 = vdwg.mxu0
        %v1470 = vadd.f32 %v1244, %v1440
        %v1471 = vadd.f32 %v1245, %v1443
        %v1472 = vadd.f32 %v1246, %v1448
        %v1473 = vadd.f32 %v1247, %v1451
        %v1474 = vadd.f32 %v1248, %v1456
        %v1475 = vadd.f32 %v1249, %v1459
        %v1476 = vadd.f32 %v1250, %v1464
        %v1477 = vadd.f32 %v1251, %v1467
        %v1478 = vld [vmem:[%s328 + $0x10] sm:$0xff]
        %v1479 = vld [vmem:[%s328 + $0x18] sm:$0xff]
        %v1480 = vld [vmem:[%s328 + $0x20] sm:$0xff]
        %v1481 = vld [vmem:[%s328 + $0x28] sm:$0xff]
        %v1482 = vld [vmem:[%s328 + $0x30] sm:$0xff]
        %v1483 = vld [vmem:[%s328 + $0x38] sm:$0xff]
        %v1484 = vld [vmem:[%s328 + $0x40] sm:$0xff]
        %v1485 = vld [vmem:[%s328 + $0x48] sm:$0xff]
        %s1486 = scalar_lea.vmem %s3, 480
        %v1487 = vld [vmem:[%s1486] sm:$0xf]
        %v1488 = vld [vmem:[%s1486 + $0x4] sm:$0xf]
        %v1489 = vld [vmem:[%s1486 + $0x8] sm:$0xf]
        %v1490 = vld [vmem:[%s1486 + $0xc] sm:$0xf]
        %v1491 = vld [vmem:[%s1486 + $0x10] sm:$0xf]
        %v1492 = vld [vmem:[%s1486 + $0x14] sm:$0xf]
        %v1493 = vld [vmem:[%s1486 + $0x18] sm:$0xf]
        %v1494 = vld [vmem:[%s1486 + $0x1c] sm:$0xf]
        %v1495 = vld [vmem:[%s1486 + $0x20] sm:$0xf]
        %v1496 = vld [vmem:[%s1486 + $0x24] sm:$0xf]
        %v1497 = vld [vmem:[%s1486 + $0x28] sm:$0xf]
        %v1498 = vld [vmem:[%s1486 + $0x2c] sm:$0xf]
        %v1499 = vld [vmem:[%s1486 + $0x30] sm:$0xf]
        %v1500 = vld [vmem:[%s1486 + $0x34] sm:$0xf]
        %v1501 = vld [vmem:[%s1486 + $0x38] sm:$0xf]
        %v1502 = vld [vmem:[%s1486 + $0x3c] sm:$0xf]
        %v1503 = vld [vmem:[%s1486 + $0x40] sm:$0xf]
        %v1504 = vld [vmem:[%s1486 + $0x44] sm:$0xf]
        %v1505 = vld [vmem:[%s1486 + $0x48] sm:$0xf]
        %v1506 = vld [vmem:[%s1486 + $0x4c] sm:$0xf]
        %v1507 = vld [vmem:[%s1486 + $0x50] sm:$0xf]
        %v1508 = vld [vmem:[%s1486 + $0x54] sm:$0xf]
        %v1509 = vld [vmem:[%s1486 + $0x58] sm:$0xf]
        %v1510 = vld [vmem:[%s1486 + $0x5c] sm:$0xf]
        %v1519 = vunpack.c.l.b16 %v1478
        %v1520 = vunpack.c.h.b16 %v1478
        %v1521 = vunpack.c.l.b16 %v1479
        %v1522 = vunpack.c.h.b16 %v1479
        %v1523 = vunpack.c.l.b16 %v1480
        %v1524 = vunpack.c.h.b16 %v1480
        %v1525 = vunpack.c.l.b16 %v1481
        %v1526 = vunpack.c.h.b16 %v1481
        %v1527 = vunpack.c.l.b16 %v1482
        %v1528 = vunpack.c.h.b16 %v1482
        %v1529 = vunpack.c.l.b16 %v1483
        %v1530 = vunpack.c.h.b16 %v1483
        %v1531 = vunpack.c.l.b16 %v1484
        %v1532 = vunpack.c.h.b16 %v1484
        %v1533 = vunpack.c.l.b16 %v1485
        %v1534 = vunpack.c.h.b16 %v1485
        %v1535 = vpack.c.b16 %v1521, %v1519
        %v1536 = vpack.c.b16 %v1522, %v1520
        %v1537 = vpack.c.b16 %v1525, %v1523
        %v1538 = vpack.c.b16 %v1526, %v1524
        %v1539 = vpack.c.b16 %v1529, %v1527
        %v1540 = vpack.c.b16 %v1530, %v1528
        %v1541 = vpack.c.b16 %v1533, %v1531
        %v1542 = vpack.c.b16 %v1534, %v1532
        %v1571 = vunpack.c.l.b16 %v1487
        %v1572 = vunpack.c.l.b16 %v1488
        %v1573 = vunpack.c.l.b16 %v1489
        %v1574 = vunpack.c.l.b16 %v1490
        %v1575 = vunpack.c.l.b16 %v1491
        %v1576 = vunpack.c.l.b16 %v1492
        %v1577 = vunpack.c.l.b16 %v1493
        %v1578 = vunpack.c.l.b16 %v1494
        %v1579 = vunpack.c.l.b16 %v1495
        %v1580 = vunpack.c.l.b16 %v1496
        %v1581 = vunpack.c.l.b16 %v1497
        %v1582 = vunpack.c.l.b16 %v1498
        %v1583 = vunpack.c.l.b16 %v1499
        %v1584 = vunpack.c.l.b16 %v1500
        %v1585 = vunpack.c.l.b16 %v1501
        %v1586 = vunpack.c.l.b16 %v1502
        %v1587 = vunpack.c.l.b16 %v1503
        %v1588 = vunpack.c.l.b16 %v1504
        %v1589 = vunpack.c.l.b16 %v1505
        %v1590 = vunpack.c.l.b16 %v1506
        %v1591 = vunpack.c.l.b16 %v1507
        %v1592 = vunpack.c.l.b16 %v1508
        %v1593 = vunpack.c.l.b16 %v1509
        %v1594 = vunpack.c.l.b16 %v1510
        %v1595 = vpack.c.b16 %v1572, %v1571
        %v1596 = vpack.c.b16 %v1574, %v1573
        %v1597 = vpack.c.b16 %v1576, %v1575
        %v1598 = vpack.c.b16 %v1578, %v1577
        %v1599 = vpack.c.b16 %v1580, %v1579
        %v1600 = vpack.c.b16 %v1582, %v1581
        %v1601 = vpack.c.b16 %v1584, %v1583
        %v1602 = vpack.c.b16 %v1586, %v1585
        %v1603 = vpack.c.b16 %v1588, %v1587
        %v1604 = vpack.c.b16 %v1590, %v1589
        %v1605 = vpack.c.b16 %v1592, %v1591
        %v1606 = vpack.c.b16 %v1594, %v1593
        %v1620 = vsel %vm558, %v1536, 0
        %v1623 = vsel %vm558, %v1538, 0
        %v1626 = vsel %vm558, %v1540, 0
        %v1629 = vsel %vm558, %v1542, 0
        %1631 = vmatprep.subr.bf16.mxu0 0
        %1632 = vmatpush1.bf16.msra.mxu0 %v1595
        %1633 = vmatprep.subr.bf16.mxu0 0
        %1634 = vmatpush1.bf16.msra.mxu0 %v1596
        %1635 = vmatprep.subr.bf16.mxu0 0
        %1636 = vmatpush1.bf16.msra.mxu0 %v1597
        %1637 = vmatprep.subr.bf16.mxu0 0
        %1638 = vmatpush1.bf16.msra.mxu0 %v1598
        %1639 = vmatprep.subr.bf16.mxu0 0
        %1640 = vmatpush1.bf16.msra.mxu0 %v1599
        %1641 = vmatprep.subr.bf16.mxu0 0
        %1642 = vmatpush1.bf16.msra.mxu0 %v1600
        %1643 = vmatprep.subr.bf16.mxu0 0
        %1644 = vmatpush1.bf16.msra.mxu0 %v1601
        %1645 = vmatprep.subr.bf16.mxu0 0
        %1646 = vmatpush1.bf16.msra.mxu0 %v1602
        %1647 = vmatprep.subr.bf16.mxu0 0
        %1648 = vmatpush1.bf16.msra.mxu0 %v1603
        %1649 = vmatprep.subr.bf16.mxu0 0
        %1650 = vmatpush1.bf16.msra.mxu0 %v1604
        %1651 = vmatprep.subr.bf16.mxu0 0
        %1652 = vmatpush1.bf16.msra.mxu0 %v1605
        %1653 = vmatprep.subr.bf16.mxu0 0
        %1654 = vmatpush1.bf16.msra.mxu0 %v1606
        %1655 = vmatprep.subr.bf16.mxu0 0
        %1656 = vmatpush1.bf16.msra.mxu0 0
        %1657 = vmatprep.subr.bf16.mxu0 0
        %1658 = vmatpush1.bf16.msra.mxu0 0
        %1659 = vmatprep.subr.bf16.mxu0 0
        %1660 = vmatpush1.bf16.msra.mxu0 0
        %1661 = vmatprep.subr.bf16.mxu0 0
        %1662 = vmatpush1.bf16.msra.mxu0 0
        %1663 = vmatprep.mubr.bf16.mxu0 %v1620
        %1664 = vmatmul.mubr.bf16.gmra.mrb[0].mxu0 %v1535
        %v1665 = vpop.f32.mrb[0].mxu0
        %v1666 = vadd.f32 0.0, %v1665
        %v1667 = vpop.f32.mrb[0].mxu0
        %v1668 = vpop.f32.mrb[0].mxu0
        %v1669 = vadd.f32 0.0, %v1668
        %v1670 = vpop.f32.mrb[0].mxu0
        %1671 = vmatprep.mubr.bf16.mxu0 %v1623
        %1672 = vmatmul.mubr.bf16.gmra.mrb[0].mxu0 %v1537
        %v1673 = vpop.f32.mrb[0].mxu0
        %v1674 = vadd.f32 0.0, %v1673
        %v1675 = vpop.f32.mrb[0].mxu0
        %v1676 = vpop.f32.mrb[0].mxu0
        %v1677 = vadd.f32 0.0, %v1676
        %v1678 = vpop.f32.mrb[0].mxu0
        %1679 = vmatprep.mubr.bf16.mxu0 %v1626
        %1680 = vmatmul.mubr.bf16.gmra.mrb[0].mxu0 %v1539
        %v1681 = vpop.f32.mrb[0].mxu0
        %v1682 = vadd.f32 0.0, %v1681
        %v1683 = vpop.f32.mrb[0].mxu0
        %v1684 = vpop.f32.mrb[0].mxu0
        %v1685 = vadd.f32 0.0, %v1684
        %v1686 = vpop.f32.mrb[0].mxu0
        %1687 = vmatprep.mubr.bf16.mxu0 %v1629
        %1688 = vmatmul.mubr.bf16.gmra.mrb[0].mxu0 %v1541
        %v1689 = vpop.f32.mrb[0].mxu0
        %v1690 = vadd.f32 0.0, %v1689
        %v1691 = vpop.f32.mrb[0].mxu0
        %v1692 = vpop.f32.mrb[0].mxu0
        %v1693 = vadd.f32 0.0, %v1692
        %v1694 = vpop.f32.mrb[0].mxu0
        %1695 = vdwg.mxu0
        %v1696 = vadd.f32 %v1470, %v1666
        %v1697 = vadd.f32 %v1471, %v1669
        %v1698 = vadd.f32 %v1472, %v1674
        %v1699 = vadd.f32 %v1473, %v1677
        %v1700 = vadd.f32 %v1474, %v1682
        %v1701 = vadd.f32 %v1475, %v1685
        %v1702 = vadd.f32 %v1476, %v1690
        %v1703 = vadd.f32 %v1477, %v1693
        %v1704 = vld [vmem:[%s337] sm:$0xff]
        %v1705 = vld [vmem:[%s337 + $0x8] sm:$0xff]
        %v1706 = vld [vmem:[%s337 + $0x10] sm:$0xff]
        %v1707 = vld [vmem:[%s337 + $0x18] sm:$0xff]
        %v1708 = vld [vmem:[%s337 + $0x20] sm:$0xff]
        %v1709 = vld [vmem:[%s337 + $0x28] sm:$0xff]
        %v1710 = vld [vmem:[%s337 + $0x30] sm:$0xff]
        %v1711 = vld [vmem:[%s337 + $0x38] sm:$0xff]
        %s1712 = scalar_lea.vmem %s3, 576
        %v1713 = vld [vmem:[%s1712] sm:$0xf]
        %v1714 = vld [vmem:[%s1712 + $0x4] sm:$0xf]
        %v1715 = vld [vmem:[%s1712 + $0x8] sm:$0xf]
        %v1716 = vld [vmem:[%s1712 + $0xc] sm:$0xf]
        %v1717 = vld [vmem:[%s1712 + $0x10] sm:$0xf]
        %v1718 = vld [vmem:[%s1712 + $0x14] sm:$0xf]
        %v1719 = vld [vmem:[%s1712 + $0x18] sm:$0xf]
        %v1720 = vld [vmem:[%s1712 + $0x1c] sm:$0xf]
        %v1721 = vld [vmem:[%s1712 + $0x20] sm:$0xf]
        %v1722 = vld [vmem:[%s1712 + $0x24] sm:$0xf]
        %v1723 = vld [vmem:[%s1712 + $0x28] sm:$0xf]
        %v1724 = vld [vmem:[%s1712 + $0x2c] sm:$0xf]
        %v1725 = vld [vmem:[%s1712 + $0x30] sm:$0xf]
        %v1726 = vld [vmem:[%s1712 + $0x34] sm:$0xf]
        %v1727 = vld [vmem:[%s1712 + $0x38] sm:$0xf]
        %v1728 = vld [vmem:[%s1712 + $0x3c] sm:$0xf]
        %v1729 = vld [vmem:[%s1712 + $0x40] sm:$0xf]
        %v1730 = vld [vmem:[%s1712 + $0x44] sm:$0xf]
        %v1731 = vld [vmem:[%s1712 + $0x48] sm:$0xf]
        %v1732 = vld [vmem:[%s1712 + $0x4c] sm:$0xf]
        %v1733 = vld [vmem:[%s1712 + $0x50] sm:$0xf]
        %v1734 = vld [vmem:[%s1712 + $0x54] sm:$0xf]
        %v1735 = vld [vmem:[%s1712 + $0x58] sm:$0xf]
        %v1736 = vld [vmem:[%s1712 + $0x5c] sm:$0xf]
        %v1745 = vunpack.c.l.b16 %v1704
        %v1746 = vunpack.c.h.b16 %v1704
        %v1747 = vunpack.c.l.b16 %v1705
        %v1748 = vunpack.c.h.b16 %v1705
        %v1749 = vunpack.c.l.b16 %v1706
        %v1750 = vunpack.c.h.b16 %v1706
        %v1751 = vunpack.c.l.b16 %v1707
        %v1752 = vunpack.c.h.b16 %v1707
        %v1753 = vunpack.c.l.b16 %v1708
        %v1754 = vunpack.c.h.b16 %v1708
        %v1755 = vunpack.c.l.b16 %v1709
        %v1756 = vunpack.c.h.b16 %v1709
        %v1757 = vunpack.c.l.b16 %v1710
        %v1758 = vunpack.c.h.b16 %v1710
        %v1759 = vunpack.c.l.b16 %v1711
        %v1760 = vunpack.c.h.b16 %v1711
        %v1761 = vpack.c.b16 %v1747, %v1745
        %v1762 = vpack.c.b16 %v1748, %v1746
        %v1763 = vpack.c.b16 %v1751, %v1749
        %v1764 = vpack.c.b16 %v1752, %v1750
        %v1765 = vpack.c.b16 %v1755, %v1753
        %v1766 = vpack.c.b16 %v1756, %v1754
        %v1767 = vpack.c.b16 %v1759, %v1757
        %v1768 = vpack.c.b16 %v1760, %v1758
        %v1797 = vunpack.c.l.b16 %v1713
        %v1798 = vunpack.c.l.b16 %v1714
        %v1799 = vunpack.c.l.b16 %v1715
        %v1800 = vunpack.c.l.b16 %v1716
        %v1801 = vunpack.c.l.b16 %v1717
        %v1802 = vunpack.c.l.b16 %v1718
        %v1803 = vunpack.c.l.b16 %v1719
        %v1804 = vunpack.c.l.b16 %v1720
        %v1805 = vunpack.c.l.b16 %v1721
        %v1806 = vunpack.c.l.b16 %v1722
        %v1807 = vunpack.c.l.b16 %v1723
        %v1808 = vunpack.c.l.b16 %v1724
        %v1809 = vunpack.c.l.b16 %v1725
        %v1810 = vunpack.c.l.b16 %v1726
        %v1811 = vunpack.c.l.b16 %v1727
        %v1812 = vunpack.c.l.b16 %v1728
        %v1813 = vunpack.c.l.b16 %v1729
        %v1814 = vunpack.c.l.b16 %v1730
        %v1815 = vunpack.c.l.b16 %v1731
        %v1816 = vunpack.c.l.b16 %v1732
        %v1817 = vunpack.c.l.b16 %v1733
        %v1818 = vunpack.c.l.b16 %v1734
        %v1819 = vunpack.c.l.b16 %v1735
        %v1820 = vunpack.c.l.b16 %v1736
        %v1821 = vpack.c.b16 %v1798, %v1797
        %v1822 = vpack.c.b16 %v1800, %v1799
        %v1823 = vpack.c.b16 %v1802, %v1801
        %v1824 = vpack.c.b16 %v1804, %v1803
        %v1825 = vpack.c.b16 %v1806, %v1805
        %v1826 = vpack.c.b16 %v1808, %v1807
        %v1827 = vpack.c.b16 %v1810, %v1809
        %v1828 = vpack.c.b16 %v1812, %v1811
        %v1829 = vpack.c.b16 %v1814, %v1813
        %v1830 = vpack.c.b16 %v1816, %v1815
        %v1831 = vpack.c.b16 %v1818, %v1817
        %v1832 = vpack.c.b16 %v1820, %v1819
        %v1846 = vsel %vm558, %v1762, 0
        %v1849 = vsel %vm558, %v1764, 0
        %v1852 = vsel %vm558, %v1766, 0
        %v1855 = vsel %vm558, %v1768, 0
        %1857 = vmatprep.subr.bf16.mxu0 0
        %1858 = vmatpush1.bf16.msra.mxu0 %v1821
        %1859 = vmatprep.subr.bf16.mxu0 0
        %1860 = vmatpush1.bf16.msra.mxu0 %v1822
        %1861 = vmatprep.subr.bf16.mxu0 0
        %1862 = vmatpush1.bf16.msra.mxu0 %v1823
        %1863 = vmatprep.subr.bf16.mxu0 0
        %1864 = vmatpush1.bf16.msra.mxu0 %v1824
        %1865 = vmatprep.subr.bf16.mxu0 0
        %1866 = vmatpush1.bf16.msra.mxu0 %v1825
        %1867 = vmatprep.subr.bf16.mxu0 0
        %1868 = vmatpush1.bf16.msra.mxu0 %v1826
        %1869 = vmatprep.subr.bf16.mxu0 0
        %1870 = vmatpush1.bf16.msra.mxu0 %v1827
        %1871 = vmatprep.subr.bf16.mxu0 0
        %1872 = vmatpush1.bf16.msra.mxu0 %v1828
        %1873 = vmatprep.subr.bf16.mxu0 0
        %1874 = vmatpush1.bf16.msra.mxu0 %v1829
        %1875 = vmatprep.subr.bf16.mxu0 0
        %1876 = vmatpush1.bf16.msra.mxu0 %v1830
        %1877 = vmatprep.subr.bf16.mxu0 0
        %1878 = vmatpush1.bf16.msra.mxu0 %v1831
        %1879 = vmatprep.subr.bf16.mxu0 0
        %1880 = vmatpush1.bf16.msra.mxu0 %v1832
        %1881 = vmatprep.subr.bf16.mxu0 0
        %1882 = vmatpush1.bf16.msra.mxu0 0
        %1883 = vmatprep.subr.bf16.mxu0 0
        %1884 = vmatpush1.bf16.msra.mxu0 0
        %1885 = vmatprep.subr.bf16.mxu0 0
        %1886 = vmatpush1.bf16.msra.mxu0 0
        %1887 = vmatprep.subr.bf16.mxu0 0
        %1888 = vmatpush1.bf16.msra.mxu0 0
        %1889 = vmatprep.mubr.bf16.mxu0 %v1846
        %1890 = vmatmul.mubr.bf16.gmra.mrb[0].mxu0 %v1761
        %v1891 = vpop.f32.mrb[0].mxu0
        %v1892 = vadd.f32 0.0, %v1891
        %v1893 = vpop.f32.mrb[0].mxu0
        %v1894 = vpop.f32.mrb[0].mxu0
        %v1895 = vadd.f32 0.0, %v1894
        %v1896 = vpop.f32.mrb[0].mxu0
        %1897 = vmatprep.mubr.bf16.mxu0 %v1849
        %1898 = vmatmul.mubr.bf16.gmra.mrb[0].mxu0 %v1763
        %v1899 = vpop.f32.mrb[0].mxu0
        %v1900 = vadd.f32 0.0, %v1899
        %v1901 = vpop.f32.mrb[0].mxu0
        %v1902 = vpop.f32.mrb[0].mxu0
        %v1903 = vadd.f32 0.0, %v1902
        %v1904 = vpop.f32.mrb[0].mxu0
        %1905 = vmatprep.mubr.bf16.mxu0 %v1852
        %1906 = vmatmul.mubr.bf16.gmra.mrb[0].mxu0 %v1765
        %v1907 = vpop.f32.mrb[0].mxu0
        %v1908 = vadd.f32 0.0, %v1907
        %v1909 = vpop.f32.mrb[0].mxu0
        %v1910 = vpop.f32.mrb[0].mxu0
        %v1911 = vadd.f32 0.0, %v1910
        %v1912 = vpop.f32.mrb[0].mxu0
        %1913 = vmatprep.mubr.bf16.mxu0 %v1855
        %1914 = vmatmul.mubr.bf16.gmra.mrb[0].mxu0 %v1767
        %v1915 = vpop.f32.mrb[0].mxu0
        %v1916 = vadd.f32 0.0, %v1915
        %v1917 = vpop.f32.mrb[0].mxu0
        %v1918 = vpop.f32.mrb[0].mxu0
        %v1919 = vadd.f32 0.0, %v1918
        %v1920 = vpop.f32.mrb[0].mxu0
        %1921 = vdwg.mxu0
        %v1922 = vadd.f32 %v1696, %v1892
        %v1923 = vadd.f32 %v1697, %v1895
        %v1924 = vadd.f32 %v1698, %v1900
        %v1925 = vadd.f32 %v1699, %v1903
        %v1926 = vadd.f32 %v1700, %v1908
        %v1927 = vadd.f32 %v1701, %v1911
        %v1928 = vadd.f32 %v1702, %v1916
        %v1929 = vadd.f32 %v1703, %v1919
        %v1930 = vld [vmem:[%s337 + $0x8] sm:$0xff]
        %v1931 = vld [vmem:[%s337 + $0x10] sm:$0xff]
        %v1932 = vld [vmem:[%s337 + $0x18] sm:$0xff]
        %v1933 = vld [vmem:[%s337 + $0x20] sm:$0xff]
        %v1934 = vld [vmem:[%s337 + $0x28] sm:$0xff]
        %v1935 = vld [vmem:[%s337 + $0x30] sm:$0xff]
        %v1936 = vld [vmem:[%s337 + $0x38] sm:$0xff]
        %v1937 = vld [vmem:[%s337 + $0x40] sm:$0xff]
        %s1938 = scalar_lea.vmem %s3, 672
        %v1939 = vld [vmem:[%s1938] sm:$0xf]
        %v1940 = vld [vmem:[%s1938 + $0x4] sm:$0xf]
        %v1941 = vld [vmem:[%s1938 + $0x8] sm:$0xf]
        %v1942 = vld [vmem:[%s1938 + $0xc] sm:$0xf]
        %v1943 = vld [vmem:[%s1938 + $0x10] sm:$0xf]
        %v1944 = vld [vmem:[%s1938 + $0x14] sm:$0xf]
        %v1945 = vld [vmem:[%s1938 + $0x18] sm:$0xf]
        %v1946 = vld [vmem:[%s1938 + $0x1c] sm:$0xf]
        %v1947 = vld [vmem:[%s1938 + $0x20] sm:$0xf]
        %v1948 = vld [vmem:[%s1938 + $0x24] sm:$0xf]
        %v1949 = vld [vmem:[%s1938 + $0x28] sm:$0xf]
        %v1950 = vld [vmem:[%s1938 + $0x2c] sm:$0xf]
        %v1951 = vld [vmem:[%s1938 + $0x30] sm:$0xf]
        %v1952 = vld [vmem:[%s1938 + $0x34] sm:$0xf]
        %v1953 = vld [vmem:[%s1938 + $0x38] sm:$0xf]
        %v1954 = vld [vmem:[%s1938 + $0x3c] sm:$0xf]
        %v1955 = vld [vmem:[%s1938 + $0x40] sm:$0xf]
        %v1956 = vld [vmem:[%s1938 + $0x44] sm:$0xf]
        %v1957 = vld [vmem:[%s1938 + $0x48] sm:$0xf]
        %v1958 = vld [vmem:[%s1938 + $0x4c] sm:$0xf]
        %v1959 = vld [vmem:[%s1938 + $0x50] sm:$0xf]
        %v1960 = vld [vmem:[%s1938 + $0x54] sm:$0xf]
        %v1961 = vld [vmem:[%s1938 + $0x58] sm:$0xf]
        %v1962 = vld [vmem:[%s1938 + $0x5c] sm:$0xf]
        %v1971 = vunpack.c.l.b16 %v1930
        %v1972 = vunpack.c.h.b16 %v1930
        %v1973 = vunpack.c.l.b16 %v1931
        %v1974 = vunpack.c.h.b16 %v1931
        %v1975 = vunpack.c.l.b16 %v1932
        %v1976 = vunpack.c.h.b16 %v1932
        %v1977 = vunpack.c.l.b16 %v1933
        %v1978 = vunpack.c.h.b16 %v1933
        %v1979 = vunpack.c.l.b16 %v1934
        %v1980 = vunpack.c.h.b16 %v1934
        %v1981 = vunpack.c.l.b16 %v1935
        %v1982 = vunpack.c.h.b16 %v1935
        %v1983 = vunpack.c.l.b16 %v1936
        %v1984 = vunpack.c.h.b16 %v1936
        %v1985 = vunpack.c.l.b16 %v1937
        %v1986 = vunpack.c.h.b16 %v1937
        %v1987 = vpack.c.b16 %v1973, %v1971
        %v1988 = vpack.c.b16 %v1974, %v1972
        %v1989 = vpack.c.b16 %v1977, %v1975
        %v1990 = vpack.c.b16 %v1978, %v1976
        %v1991 = vpack.c.b16 %v1981, %v1979
        %v1992 = vpack.c.b16 %v1982, %v1980
        %v1993 = vpack.c.b16 %v1985, %v1983
        %v1994 = vpack.c.b16 %v1986, %v1984
        %v2023 = vunpack.c.l.b16 %v1939
        %v2024 = vunpack.c.l.b16 %v1940
        %v2025 = vunpack.c.l.b16 %v1941
        %v2026 = vunpack.c.l.b16 %v1942
        %v2027 = vunpack.c.l.b16 %v1943
        %v2028 = vunpack.c.l.b16 %v1944
        %v2029 = vunpack.c.l.b16 %v1945
        %v2030 = vunpack.c.l.b16 %v1946
        %v2031 = vunpack.c.l.b16 %v1947
        %v2032 = vunpack.c.l.b16 %v1948
        %v2033 = vunpack.c.l.b16 %v1949
        %v2034 = vunpack.c.l.b16 %v1950
        %v2035 = vunpack.c.l.b16 %v1951
        %v2036 = vunpack.c.l.b16 %v1952
        %v2037 = vunpack.c.l.b16 %v1953
        %v2038 = vunpack.c.l.b16 %v1954
        %v2039 = vunpack.c.l.b16 %v1955
        %v2040 = vunpack.c.l.b16 %v1956
        %v2041 = vunpack.c.l.b16 %v1957
        %v2042 = vunpack.c.l.b16 %v1958
        %v2043 = vunpack.c.l.b16 %v1959
        %v2044 = vunpack.c.l.b16 %v1960
        %v2045 = vunpack.c.l.b16 %v1961
        %v2046 = vunpack.c.l.b16 %v1962
        %v2047 = vpack.c.b16 %v2024, %v2023
        %v2048 = vpack.c.b16 %v2026, %v2025
        %v2049 = vpack.c.b16 %v2028, %v2027
        %v2050 = vpack.c.b16 %v2030, %v2029
        %v2051 = vpack.c.b16 %v2032, %v2031
        %v2052 = vpack.c.b16 %v2034, %v2033
        %v2053 = vpack.c.b16 %v2036, %v2035
        %v2054 = vpack.c.b16 %v2038, %v2037
        %v2055 = vpack.c.b16 %v2040, %v2039
        %v2056 = vpack.c.b16 %v2042, %v2041
        %v2057 = vpack.c.b16 %v2044, %v2043
        %v2058 = vpack.c.b16 %v2046, %v2045
        %v2072 = vsel %vm558, %v1988, 0
        %v2075 = vsel %vm558, %v1990, 0
        %v2078 = vsel %vm558, %v1992, 0
        %v2081 = vsel %vm558, %v1994, 0
        %2083 = vmatprep.subr.bf16.mxu0 0
        %2084 = vmatpush1.bf16.msra.mxu0 %v2047
        %2085 = vmatprep.subr.bf16.mxu0 0
        %2086 = vmatpush1.bf16.msra.mxu0 %v2048
        %2087 = vmatprep.subr.bf16.mxu0 0
        %2088 = vmatpush1.bf16.msra.mxu0 %v2049
        %2089 = vmatprep.subr.bf16.mxu0 0
        %2090 = vmatpush1.bf16.msra.mxu0 %v2050
        %2091 = vmatprep.subr.bf16.mxu0 0
        %2092 = vmatpush1.bf16.msra.mxu0 %v2051
        %2093 = vmatprep.subr.bf16.mxu0 0
        %2094 = vmatpush1.bf16.msra.mxu0 %v2052
        %2095 = vmatprep.subr.bf16.mxu0 0
        %2096 = vmatpush1.bf16.msra.mxu0 %v2053
        %2097 = vmatprep.subr.bf16.mxu0 0
        %2098 = vmatpush1.bf16.msra.mxu0 %v2054
        %2099 = vmatprep.subr.bf16.mxu0 0
        %2100 = vmatpush1.bf16.msra.mxu0 %v2055
        %2101 = vmatprep.subr.bf16.mxu0 0
        %2102 = vmatpush1.bf16.msra.mxu0 %v2056
        %2103 = vmatprep.subr.bf16.mxu0 0
        %2104 = vmatpush1.bf16.msra.mxu0 %v2057
        %2105 = vmatprep.subr.bf16.mxu0 0
        %2106 = vmatpush1.bf16.msra.mxu0 %v2058
        %2107 = vmatprep.subr.bf16.mxu0 0
        %2108 = vmatpush1.bf16.msra.mxu0 0
        %2109 = vmatprep.subr.bf16.mxu0 0
        %2110 = vmatpush1.bf16.msra.mxu0 0
        %2111 = vmatprep.subr.bf16.mxu0 0
        %2112 = vmatpush1.bf16.msra.mxu0 0
        %2113 = vmatprep.subr.bf16.mxu0 0
        %2114 = vmatpush1.bf16.msra.mxu0 0
        %2115 = vmatprep.mubr.bf16.mxu0 %v2072
        %2116 = vmatmul.mubr.bf16.gmra.mrb[0].mxu0 %v1987
        %v2117 = vpop.f32.mrb[0].mxu0
        %v2118 = vadd.f32 0.0, %v2117
        %v2119 = vpop.f32.mrb[0].mxu0
        %v2120 = vpop.f32.mrb[0].mxu0
        %v2121 = vadd.f32 0.0, %v2120
        %v2122 = vpop.f32.mrb[0].mxu0
        %2123 = vmatprep.mubr.bf16.mxu0 %v2075
        %2124 = vmatmul.mubr.bf16.gmra.mrb[0].mxu0 %v1989
        %v2125 = vpop.f32.mrb[0].mxu0
        %v2126 = vadd.f32 0.0, %v2125
        %v2127 = vpop.f32.mrb[0].mxu0
        %v2128 = vpop.f32.mrb[0].mxu0
        %v2129 = vadd.f32 0.0, %v2128
        %v2130 = vpop.f32.mrb[0].mxu0
        %2131 = vmatprep.mubr.bf16.mxu0 %v2078
        %2132 = vmatmul.mubr.bf16.gmra.mrb[0].mxu0 %v1991
        %v2133 = vpop.f32.mrb[0].mxu0
        %v2134 = vadd.f32 0.0, %v2133
        %v2135 = vpop.f32.mrb[0].mxu0
        %v2136 = vpop.f32.mrb[0].mxu0
        %v2137 = vadd.f32 0.0, %v2136
        %v2138 = vpop.f32.mrb[0].mxu0
        %2139 = vmatprep.mubr.bf16.mxu0 %v2081
        %2140 = vmatmul.mubr.bf16.gmra.mrb[0].mxu0 %v1993
        %v2141 = vpop.f32.mrb[0].mxu0
        %v2142 = vadd.f32 0.0, %v2141
        %v2143 = vpop.f32.mrb[0].mxu0
        %v2144 = vpop.f32.mrb[0].mxu0
        %v2145 = vadd.f32 0.0, %v2144
        %v2146 = vpop.f32.mrb[0].mxu0
        %2147 = vdwg.mxu0
        %v2148 = vadd.f32 %v1922, %v2118
        %v2149 = vadd.f32 %v1923, %v2121
        %v2150 = vadd.f32 %v1924, %v2126
        %v2151 = vadd.f32 %v1925, %v2129
        %v2152 = vadd.f32 %v1926, %v2134
        %v2153 = vadd.f32 %v1927, %v2137
        %v2154 = vadd.f32 %v1928, %v2142
        %v2155 = vadd.f32 %v1929, %v2145
        %v2156 = vld [vmem:[%s337 + $0x10] sm:$0xff]
        %v2157 = vld [vmem:[%s337 + $0x18] sm:$0xff]
        %v2158 = vld [vmem:[%s337 + $0x20] sm:$0xff]
        %v2159 = vld [vmem:[%s337 + $0x28] sm:$0xff]
        %v2160 = vld [vmem:[%s337 + $0x30] sm:$0xff]
        %v2161 = vld [vmem:[%s337 + $0x38] sm:$0xff]
        %v2162 = vld [vmem:[%s337 + $0x40] sm:$0xff]
        %v2163 = vld [vmem:[%s337 + $0x48] sm:$0xff]
        %s2164 = scalar_lea.vmem %s3, 768
        %v2165 = vld [vmem:[%s2164] sm:$0xf]
        %v2166 = vld [vmem:[%s2164 + $0x4] sm:$0xf]
        %v2167 = vld [vmem:[%s2164 + $0x8] sm:$0xf]
        %v2168 = vld [vmem:[%s2164 + $0xc] sm:$0xf]
        %v2169 = vld [vmem:[%s2164 + $0x10] sm:$0xf]
        %v2170 = vld [vmem:[%s2164 + $0x14] sm:$0xf]
        %v2171 = vld [vmem:[%s2164 + $0x18] sm:$0xf]
        %v2172 = vld [vmem:[%s2164 + $0x1c] sm:$0xf]
        %v2173 = vld [vmem:[%s2164 + $0x20] sm:$0xf]
        %v2174 = vld [vmem:[%s2164 + $0x24] sm:$0xf]
        %v2175 = vld [vmem:[%s2164 + $0x28] sm:$0xf]
        %v2176 = vld [vmem:[%s2164 + $0x2c] sm:$0xf]
        %v2177 = vld [vmem:[%s2164 + $0x30] sm:$0xf]
        %v2178 = vld [vmem:[%s2164 + $0x34] sm:$0xf]
        %v2179 = vld [vmem:[%s2164 + $0x38] sm:$0xf]
        %v2180 = vld [vmem:[%s2164 + $0x3c] sm:$0xf]
        %v2181 = vld [vmem:[%s2164 + $0x40] sm:$0xf]
        %v2182 = vld [vmem:[%s2164 + $0x44] sm:$0xf]
        %v2183 = vld [vmem:[%s2164 + $0x48] sm:$0xf]
        %v2184 = vld [vmem:[%s2164 + $0x4c] sm:$0xf]
        %v2185 = vld [vmem:[%s2164 + $0x50] sm:$0xf]
        %v2186 = vld [vmem:[%s2164 + $0x54] sm:$0xf]
        %v2187 = vld [vmem:[%s2164 + $0x58] sm:$0xf]
        %v2188 = vld [vmem:[%s2164 + $0x5c] sm:$0xf]
        %v2197 = vunpack.c.l.b16 %v2156
        %v2198 = vunpack.c.h.b16 %v2156
        %v2199 = vunpack.c.l.b16 %v2157
        %v2200 = vunpack.c.h.b16 %v2157
        %v2201 = vunpack.c.l.b16 %v2158
        %v2202 = vunpack.c.h.b16 %v2158
        %v2203 = vunpack.c.l.b16 %v2159
        %v2204 = vunpack.c.h.b16 %v2159
        %v2205 = vunpack.c.l.b16 %v2160
        %v2206 = vunpack.c.h.b16 %v2160
        %v2207 = vunpack.c.l.b16 %v2161
        %v2208 = vunpack.c.h.b16 %v2161
        %v2209 = vunpack.c.l.b16 %v2162
        %v2210 = vunpack.c.h.b16 %v2162
        %v2211 = vunpack.c.l.b16 %v2163
        %v2212 = vunpack.c.h.b16 %v2163
        %v2213 = vpack.c.b16 %v2199, %v2197
        %v2214 = vpack.c.b16 %v2200, %v2198
        %v2215 = vpack.c.b16 %v2203, %v2201
        %v2216 = vpack.c.b16 %v2204, %v2202
        %v2217 = vpack.c.b16 %v2207, %v2205
        %v2218 = vpack.c.b16 %v2208, %v2206
        %v2219 = vpack.c.b16 %v2211, %v2209
        %v2220 = vpack.c.b16 %v2212, %v2210
        %v2249 = vunpack.c.l.b16 %v2165
        %v2250 = vunpack.c.l.b16 %v2166
        %v2251 = vunpack.c.l.b16 %v2167
        %v2252 = vunpack.c.l.b16 %v2168
        %v2253 = vunpack.c.l.b16 %v2169
        %v2254 = vunpack.c.l.b16 %v2170
        %v2255 = vunpack.c.l.b16 %v2171
        %v2256 = vunpack.c.l.b16 %v2172
        %v2257 = vunpack.c.l.b16 %v2173
        %v2258 = vunpack.c.l.b16 %v2174
        %v2259 = vunpack.c.l.b16 %v2175
        %v2260 = vunpack.c.l.b16 %v2176
        %v2261 = vunpack.c.l.b16 %v2177
        %v2262 = vunpack.c.l.b16 %v2178
        %v2263 = vunpack.c.l.b16 %v2179
        %v2264 = vunpack.c.l.b16 %v2180
        %v2265 = vunpack.c.l.b16 %v2181
        %v2266 = vunpack.c.l.b16 %v2182
        %v2267 = vunpack.c.l.b16 %v2183
        %v2268 = vunpack.c.l.b16 %v2184
        %v2269 = vunpack.c.l.b16 %v2185
        %v2270 = vunpack.c.l.b16 %v2186
        %v2271 = vunpack.c.l.b16 %v2187
        %v2272 = vunpack.c.l.b16 %v2188
        %v2273 = vpack.c.b16 %v2250, %v2249
        %v2274 = vpack.c.b16 %v2252, %v2251
        %v2275 = vpack.c.b16 %v2254, %v2253
        %v2276 = vpack.c.b16 %v2256, %v2255
        %v2277 = vpack.c.b16 %v2258, %v2257
        %v2278 = vpack.c.b16 %v2260, %v2259
        %v2279 = vpack.c.b16 %v2262, %v2261
        %v2280 = vpack.c.b16 %v2264, %v2263
        %v2281 = vpack.c.b16 %v2266, %v2265
        %v2282 = vpack.c.b16 %v2268, %v2267
        %v2283 = vpack.c.b16 %v2270, %v2269
        %v2284 = vpack.c.b16 %v2272, %v2271
        %v2298 = vsel %vm558, %v2214, 0
        %v2301 = vsel %vm558, %v2216, 0
        %v2304 = vsel %vm558, %v2218, 0
        %v2307 = vsel %vm558, %v2220, 0
        %2309 = vmatprep.subr.bf16.mxu0 0
        %2310 = vmatpush1.bf16.msra.mxu0 %v2273
        %2311 = vmatprep.subr.bf16.mxu0 0
        %2312 = vmatpush1.bf16.msra.mxu0 %v2274
        %2313 = vmatprep.subr.bf16.mxu0 0
        %2314 = vmatpush1.bf16.msra.mxu0 %v2275
        %2315 = vmatprep.subr.bf16.mxu0 0
        %2316 = vmatpush1.bf16.msra.mxu0 %v2276
        %2317 = vmatprep.subr.bf16.mxu0 0
        %2318 = vmatpush1.bf16.msra.mxu0 %v2277
        %2319 = vmatprep.subr.bf16.mxu0 0
        %2320 = vmatpush1.bf16.msra.mxu0 %v2278
        %2321 = vmatprep.subr.bf16.mxu0 0
        %2322 = vmatpush1.bf16.msra.mxu0 %v2279
        %2323 = vmatprep.subr.bf16.mxu0 0
        %2324 = vmatpush1.bf16.msra.mxu0 %v2280
        %2325 = vmatprep.subr.bf16.mxu0 0
        %2326 = vmatpush1.bf16.msra.mxu0 %v2281
        %2327 = vmatprep.subr.bf16.mxu0 0
        %2328 = vmatpush1.bf16.msra.mxu0 %v2282
        %2329 = vmatprep.subr.bf16.mxu0 0
        %2330 = vmatpush1.bf16.msra.mxu0 %v2283
        %2331 = vmatprep.subr.bf16.mxu0 0
        %2332 = vmatpush1.bf16.msra.mxu0 %v2284
        %2333 = vmatprep.subr.bf16.mxu0 0
        %2334 = vmatpush1.bf16.msra.mxu0 0
        %2335 = vmatprep.subr.bf16.mxu0 0
        %2336 = vmatpush1.bf16.msra.mxu0 0
        %2337 = vmatprep.subr.bf16.mxu0 0
        %2338 = vmatpush1.bf16.msra.mxu0 0
        %2339 = vmatprep.subr.bf16.mxu0 0
        %2340 = vmatpush1.bf16.msra.mxu0 0
        %2341 = vmatprep.mubr.bf16.mxu0 %v2298
        %2342 = vmatmul.mubr.bf16.gmra.mrb[0].mxu0 %v2213
        %v2343 = vpop.f32.mrb[0].mxu0
        %v2344 = vadd.f32 0.0, %v2343
        %v2345 = vpop.f32.mrb[0].mxu0
        %v2346 = vpop.f32.mrb[0].mxu0
        %v2347 = vadd.f32 0.0, %v2346
        %v2348 = vpop.f32.mrb[0].mxu0
        %2349 = vmatprep.mubr.bf16.mxu0 %v2301
        %2350 = vmatmul.mubr.bf16.gmra.mrb[0].mxu0 %v2215
        %v2351 = vpop.f32.mrb[0].mxu0
        %v2352 = vadd.f32 0.0, %v2351
        %v2353 = vpop.f32.mrb[0].mxu0
        %v2354 = vpop.f32.mrb[0].mxu0
        %v2355 = vadd.f32 0.0, %v2354
        %v2356 = vpop.f32.mrb[0].mxu0
        %2357 = vmatprep.mubr.bf16.mxu0 %v2304
        %2358 = vmatmul.mubr.bf16.gmra.mrb[0].mxu0 %v2217
        %v2359 = vpop.f32.mrb[0].mxu0
        %v2360 = vadd.f32 0.0, %v2359
        %v2361 = vpop.f32.mrb[0].mxu0
        %v2362 = vpop.f32.mrb[0].mxu0
        %v2363 = vadd.f32 0.0, %v2362
        %v2364 = vpop.f32.mrb[0].mxu0
        %2365 = vmatprep.mubr.bf16.mxu0 %v2307
        %2366 = vmatmul.mubr.bf16.gmra.mrb[0].mxu0 %v2219
        %v2367 = vpop.f32.mrb[0].mxu0
        %v2368 = vadd.f32 0.0, %v2367
        %v2369 = vpop.f32.mrb[0].mxu0
        %v2370 = vpop.f32.mrb[0].mxu0
        %v2371 = vadd.f32 0.0, %v2370
        %v2372 = vpop.f32.mrb[0].mxu0
        %2373 = vdwg.mxu0
        %v2374 = vadd.f32 %v2148, %v2344
        %v2375 = vadd.f32 %v2149, %v2347
        %v2376 = vadd.f32 %v2150, %v2352
        %v2377 = vadd.f32 %v2151, %v2355
        %v2378 = vadd.f32 %v2152, %v2360
        %v2379 = vadd.f32 %v2153, %v2363
        %v2380 = vadd.f32 %v2154, %v2368
        %v2381 = vadd.f32 %v2155, %v2371
        %v2382 = vld [vmem:[%s4] sm:$0x1]
        %v2384 = vlaneseq
        %v2385 = vshrl.u32 %v2384, 7
        %v2386 = vsub.s32 0, %v2385
        %v2387 = vrot.slane %v2382, %v2386
        %v2389 = vmul.f32 %v2374, %v2387
        %v2390 = vmul.f32 %v2375, %v2387
        %v2391 = vmul.f32 %v2376, %v2387
        %v2392 = vmul.f32 %v2377, %v2387
        %v2393 = vmul.f32 %v2378, %v2387
        %v2394 = vmul.f32 %v2379, %v2387
        %v2395 = vmul.f32 %v2380, %v2387
        %v2396 = vmul.f32 %v2381, %v2387
        %v2397 = vld [vmem:[%s5] sm:$0x1]
        %v2399 = vlaneseq
        %v2400 = vshrl.u32 %v2399, 7
        %v2401 = vsub.s32 0, %v2400
        %v2402 = vrot.slane %v2397, %v2401
        %v2404 = vadd.f32 %v2389, %v2402
        %v2405 = vadd.f32 %v2390, %v2402
        %v2406 = vadd.f32 %v2391, %v2402
        %v2407 = vadd.f32 %v2392, %v2402
        %v2408 = vadd.f32 %v2393, %v2402
        %v2409 = vadd.f32 %v2394, %v2402
        %v2410 = vadd.f32 %v2395, %v2402
        %v2411 = vadd.f32 %v2396, %v2402
        %v2412 = vmax.f32 %v2404, 0.0
        %v2413 = vmax.f32 %v2405, 0.0
        %v2414 = vmax.f32 %v2406, 0.0
        %v2415 = vmax.f32 %v2407, 0.0
        %v2416 = vmax.f32 %v2408, 0.0
        %v2417 = vmax.f32 %v2409, 0.0
        %v2418 = vmax.f32 %v2410, 0.0
        %v2419 = vmax.f32 %v2411, 0.0
        %vm2420 = vcmask 261120
        %2421 = vst.msk [vmem:[%s390] sm:$0xff] %vm2420, %v2412
        %2422 = vst.msk [vmem:[%s390 + $0x8] sm:$0xff] %vm2420, %v2413
        %2423 = vst.msk [vmem:[%s390 + $0x10] sm:$0xff] %vm2420, %v2414
        %2424 = vst.msk [vmem:[%s390 + $0x18] sm:$0xff] %vm2420, %v2415
        %2425 = vst.msk [vmem:[%s390 + $0x20] sm:$0xff] %vm2420, %v2416
        %2426 = vst.msk [vmem:[%s390 + $0x28] sm:$0xff] %vm2420, %v2417
        %2427 = vst.msk [vmem:[%s390 + $0x30] sm:$0xff] %vm2420, %v2418
        %2428 = vst.msk [vmem:[%s390 + $0x38] sm:$0xff] %vm2420, %v2419
        %p2429 = scmp.lt.s32.totalorder %s27, 1
        %s2430 = scalar_select %p2429, %s27, 1
        %p2431 = scmp.lt.s32.totalorder %s28, 7
        %s2432 = scalar_select %p2431, %s28, 7
        %s2433 = smul.addr %s2432, 8
        %s2434 = smul.addr %s2430, 64
        %s2435 = sadd.s32 %s2433, %s2434
        %s2436 = smul.addr %s2435, 8
        %s2437 = scalar_lea.vmem %s6, %s2436
        // Predicated region
        $region57: #{tpu_custom_call.1} parent=43 // pred_check
          %p2438 = pneg %p206
        $region58: #{tpu_custom_call.1} parent=43 // pred_check_branch
          %2440 = sbr.rel (%p2438) target = $region60
        $region59: #{tpu_custom_call.1} parent=43 // pred_region
          _
        $region60: #{tpu_custom_call.1} parent=43 // pred_fallthru
          _
      $region44: #{tpu_custom_call.1} parent=5 // pred_fallthru
        _
      %p2441 = scmp.le.s32.totalorder 2, %s18
      // Predicated region
      $region61: #{tpu_custom_call.1} parent=5 // pred_check
        %p2442 = pneg %p2441
      $region62: #{tpu_custom_call.1} parent=5 // pred_check_branch
        %2444 = sbr.rel (%p2442) target = $region64
      $region63: #{tpu_custom_call.1} parent=5 // pred_region
        %s2445 = ssub.s32 %s18, 2
        // Predicated region
        $region65: #{tpu_custom_call.1} parent=63 // pred_check
          %p2446 = pneg %p212
        $region66: #{tpu_custom_call.1} parent=63 // pred_check_branch
          %2448 = sbr.rel (%p2446) target = $region68
        $region67: #{tpu_custom_call.1} parent=63 // pred_region
          %p2449 = scmp.lt.s32.totalorder %s29, 1
          %s2450 = scalar_select %p2449, %s29, 1
          %p2451 = scmp.lt.s32.totalorder %s30, 7
          %s2452 = scalar_select %p2451, %s30, 7
          %s2453 = smul.addr %s2452, 8
          %s2454 = smul.addr %s2450, 64
          %s2455 = sadd.s32 %s2453, %s2454
          %s2456 = smul.addr %s2455, 8
          %s2457 = scalar_lea.vmem %s6, %s2456
        $region68: #{tpu_custom_call.1} parent=63 // pred_fallthru
          _
      $region64: #{tpu_custom_call.1} parent=5 // pred_fallthru
        _
    $region6: #{tpu_custom_call.1} parent=1 // loop_footer
      %s22 = sadd.s32 1, %s18
    $region7: #{tpu_custom_call.1} parent=1 // loop_footer_branch
      %17 = sbr.rel target = $region3
    $region8: #{tpu_custom_call.1} parent=1 // loop_exit
      _
    %2458 = vsyncpa [#allocation3], 1
    %s2459 = scalar_lea.sflag [#allocation3], 1
    %2460 = vsyncpa %s2459, 1
    %2461 = vsyncpa [#allocation5], 1
    %s2462 = scalar_lea.sflag [#allocation5], 1
    %2463 = vsyncpa %s2462, 1

</llo_original>
